<compile_context>
chip_gen: v6e
topology: v6e:2x2x1
jax: 0.10.0
libtpu: 0.0.40
codegen_flags: <defaults>
</compile_context>

<pallas_src>
import functools

import jax
import jax.numpy as jnp
from jax.experimental import pallas as pl
from jax.experimental.pallas import tpu as pltpu


# ----------------------------------------------------------------------------
# Helpers
# ----------------------------------------------------------------------------
def _layernorm(x, gamma, beta, eps=1e-5):
    mu = jnp.mean(x, axis=-1, keepdims=True)
    var = jnp.mean((x - mu) ** 2, axis=-1, keepdims=True)
    return (x - mu) * jax.lax.rsqrt(var + eps) * gamma + beta


def _pick_tile(n, max_tile):
    """Largest tile <= max_tile that divides n (multiple of 8 if < n)."""
    if n <= max_tile:
        return n
    for t in range(max_tile, 7, -1):
        if n % t == 0 and t % 8 == 0:
            return t
    raise ValueError(
        f"sequence length {n} has no tile divisor <= {max_tile} that is a "
        f"multiple of 8; pad the sequence or pick a different tile size")


# ----------------------------------------------------------------------------
# Pass 1: fused LayerNorm0 + Q/K/V projection  ->  bf16 (B, H, N, dh) in HBM
# ----------------------------------------------------------------------------
def qkv_kernel(x_ref, g0_ref, b0_ref, wq_ref, wk_ref, wv_ref,
               q_out, k_out, v_out, *, heads, scale):
    tkv, d = x_ref.shape[1], x_ref.shape[2]
    dh = d // heads
    of = _layernorm(x_ref[0], g0_ref[0], b0_ref[0]).astype(jnp.bfloat16)

    def project(w_ref, s):
        # (D_out, tkv) = W @ of^T   (contract over in-features)
        t = jax.lax.dot_general(w_ref[...], of, (((1,), (1,)), ((), ())),
                                preferred_element_type=jnp.float32)
        if s is not None:
            t = t * s
        # (D, tkv) -> (H, dh, tkv) -> (H, tkv, dh): done once per token tile.
        t = jnp.swapaxes(t.reshape(heads, dh, tkv), 1, 2)
        return t.astype(jnp.bfloat16)

    q_out[0] = project(wq_ref, scale)      # softmax scale folded into q
    k_out[0] = project(wk_ref, None)
    v_out[0] = project(wv_ref, None)


# ----------------------------------------------------------------------------
# Pass 2: attention + out-proj + residual + FFN + residual
# ----------------------------------------------------------------------------
def make_layer_kernel(return_attn):
    def kernel(x_ref, q_ref, k_ref, v_ref, wo_ref, bo_ref,
               g1_ref, b1_ref, w1_ref, bf1_ref, w2_ref, bf2_ref,
               xout_ref, *maybe_attn):
        bf16 = jnp.bfloat16
        xt = x_ref[0]                                        # (tq, D)    f32
        q = q_ref[0]                                         # (H, tq, dh) bf16
        k = k_ref[0]                                         # (H, N,  dh) bf16
        v = v_ref[0]                                         # (H, N,  dh) bf16

        # scores[h, q, k] over all keys of this batch element
        scores = jnp.einsum('hqd,hkd->hqk', q, k,
                            preferred_element_type=jnp.float32)   # (H, tq, N)
        m = jnp.max(scores, axis=-1, keepdims=True)
        p = jnp.exp(scores - m)
        inv_denom = pl.reciprocal(jnp.sum(p, axis=-1, keepdims=True),
                                  approx=True)                    # (H, tq, 1)

        if return_attn:
            attn_ref = maybe_attn[0]
            attn = p * inv_denom
            attn_ref[0] = attn.astype(attn_ref.dtype)
            outh = jnp.einsum('hqk,hkd->hqd', attn.astype(bf16), v,
                              preferred_element_type=jnp.float32)  # (H, tq, dh)
        else:
            # PV with unnormalized p; normalize the much smaller (H,tq,dh) output.
            outh = jnp.einsum('hqk,hkd->hqd', p.astype(bf16), v,
                              preferred_element_type=jnp.float32)
            outh = outh * inv_denom

        # output projection: per-head matmul then sum over heads (== concat @ Wo)
        projh = jnp.einsum('hqd,hde->hqe', outh.astype(bf16), wo_ref[...],
                           preferred_element_type=jnp.float32)     # (H, tq, D)
        proj = jnp.sum(projh, axis=0) + bo_ref[0]
        x1 = proj + xt                                             # residual 1

        # feed-forward
        o2 = _layernorm(x1, g1_ref[0], b1_ref[0]).astype(bf16)
        hid = jnp.dot(o2, w1_ref[...],
                      preferred_element_type=jnp.float32) + bf1_ref[0]
        hid = jax.nn.gelu(hid, approximate=False)                  # exact GELU
        ff = jnp.dot(hid.astype(bf16), w2_ref[...],
                     preferred_element_type=jnp.float32) + bf2_ref[0]
        xout_ref[0] = x1 + ff                                      # residual 2

    return kernel


# ----------------------------------------------------------------------------
# pallas_call wrappers (two fused calls per layer)
# ----------------------------------------------------------------------------
def transformer_layer(x, layer, heads, *, q_tile=256, kv_tile=256,
                      return_attn=True, attn_dtype=jnp.float32,
                      vmem_limit_bytes=64 * 1024 * 1024):
    B, N, D = x.shape
    assert D % heads == 0
    dh = D // heads
    M = layer["w1"].shape[1]
    scale = D ** (-0.5)          # module uses dim**-0.5 (not head_dim**-0.5)

    # ---- pass 1: QKV projection ---------------------------------------------
    tkv = _pick_tile(N, kv_tile)
    cqk = lambda b, t: (0, 0)
    q_hbm, k_hbm, v_hbm = pl.pallas_call(
        functools.partial(qkv_kernel, heads=heads, scale=scale),
        out_shape=tuple(jax.ShapeDtypeStruct((B, heads, N, dh), jnp.bfloat16)
                        for _ in range(3)),
        grid=(B, N // tkv),
        in_specs=[
            pl.BlockSpec((1, tkv, D), lambda b, t: (b, t, 0)),   # x tile
            pl.BlockSpec((1, D), cqk),                           # ln0 gamma
            pl.BlockSpec((1, D), cqk),                           # ln0 beta
            pl.BlockSpec((D, D), cqk),                           # Wq^T (bf16)
            pl.BlockSpec((D, D), cqk),                           # Wk^T (bf16)
            pl.BlockSpec((D, D), cqk),                           # Wv^T (bf16)
        ],
        out_specs=tuple(pl.BlockSpec((1, heads, tkv, dh),
                                     lambda b, t: (b, 0, t, 0)) for _ in range(3)),
        compiler_params=pltpu.CompilerParams(
            dimension_semantics=("parallel", "parallel"),
            vmem_limit_bytes=vmem_limit_bytes),
    )(x, layer["ln0_g"], layer["ln0_b"],
      layer["wq_t"], layer["wk_t"], layer["wv_t"])

    # ---- pass 2: attention + FFN --------------------------------------------
    tq = _pick_tile(N, q_tile)
    num_qt = N // tq
    kernel = make_layer_kernel(return_attn)

    out_shape = [jax.ShapeDtypeStruct((B, N, D), jnp.float32)]
    out_specs = [pl.BlockSpec((1, tq, D), lambda b, qt: (b, qt, 0))]
    if return_attn:
        out_shape.append(jax.ShapeDtypeStruct((B, heads, N, N), attn_dtype))
        out_specs.append(pl.BlockSpec((1, heads, tq, N),
                                      lambda b, qt: (b, 0, qt, 0)))

    cw = lambda b, qt: (0, 0)
    cw3 = lambda b, qt: (0, 0, 0)
    results = pl.pallas_call(
        kernel,
        out_shape=tuple(out_shape),
        grid=(B, num_qt),
        in_specs=[
            pl.BlockSpec((1, tq, D), lambda b, qt: (b, qt, 0)),          # x tile
            pl.BlockSpec((1, heads, tq, dh), lambda b, qt: (b, 0, qt, 0)),  # q
            pl.BlockSpec((1, heads, N, dh), lambda b, qt: (b, 0, 0, 0)),    # k
            pl.BlockSpec((1, heads, N, dh), lambda b, qt: (b, 0, 0, 0)),    # v
            pl.BlockSpec((heads, dh, D), cw3),                           # Wo per-head
            pl.BlockSpec((1, D), cw),                                    # bo
            pl.BlockSpec((1, D), cw),                                    # ln1 gamma
            pl.BlockSpec((1, D), cw),                                    # ln1 beta
            pl.BlockSpec((D, M), cw),                                    # W1 (bf16)
            pl.BlockSpec((1, M), cw),                                    # b1
            pl.BlockSpec((M, D), cw),                                    # W2 (bf16)
            pl.BlockSpec((1, D), cw),                                    # b2
        ],
        out_specs=tuple(out_specs),
        compiler_params=pltpu.CompilerParams(
            dimension_semantics=("parallel", "parallel"),
            vmem_limit_bytes=vmem_limit_bytes),
    )(x, q_hbm, k_hbm, v_hbm,
      layer["wo_h"], layer["bo"], layer["ln1_g"], layer["ln1_b"],
      layer["w1"], layer["b1"], layer["w2"], layer["b2"])

    if return_attn:
        x_out, attn = results
        return x_out, attn
    (x_out,) = results
    return x_out, None


def transformer_forward(x, params, heads, *, q_tile=256, kv_tile=256,
                        return_attn=True, attn_dtype=jnp.float32):
    """Pallas forward.  x: (B, N, D) f32.  Returns (x_out, [attn_0, ...])."""
    attentions = []
    for layer in params:
        x, attn = transformer_layer(x, layer, heads, q_tile=q_tile,
                                    kv_tile=kv_tile, return_attn=return_attn,
                                    attn_dtype=attn_dtype)
        attentions.append(attn)
    return x, attentions


# ----------------------------------------------------------------------------
# Pure-JAX reference (mirrors the PyTorch forward, f32 math on bf16 weights)
# ----------------------------------------------------------------------------
def transformer_reference(x, params, heads):
    attentions = []
    for layer in params:
        B, N, D = x.shape
        dh = D // heads
        scale = D ** (-0.5)
        wq = layer["wq_t"].astype(jnp.float32).T
        wk = layer["wk_t"].astype(jnp.float32).T
        wv = layer["wv_t"].astype(jnp.float32).T
        wo = layer["wo_h"].astype(jnp.float32).reshape(D, D)
        o = _layernorm(x, layer["ln0_g"][0], layer["ln0_b"][0])
        q = (o @ wq).reshape(B, N, heads, dh).transpose(0, 2, 1, 3)
        k = (o @ wk).reshape(B, N, heads, dh).transpose(0, 2, 1, 3)
        v = (o @ wv).reshape(B, N, heads, dh).transpose(0, 2, 1, 3)
        dots = jnp.einsum("bhid,bhjd->bhij", q, k) * scale
        attn = jax.nn.softmax(dots, axis=-1)
        out = jnp.einsum("bhij,bhjd->bhid", attn, v)
        out = out.transpose(0, 2, 1, 3).reshape(B, N, D)
        out = out @ wo + layer["bo"][0]
        attentions.append(attn)
        x = out + x
        ff = _layernorm(x, layer["ln1_g"][0], layer["ln1_b"][0])
        ff = jax.nn.gelu(ff @ layer["w1"].astype(jnp.float32) + layer["b1"][0],
                         approximate=False)
        ff = ff @ layer["w2"].astype(jnp.float32) + layer["b2"][0]
        x = ff + x
    return x, attentions


# ----------------------------------------------------------------------------
# Deterministic parameter init (weights stored bf16, head-major layouts)
# ----------------------------------------------------------------------------
def init_params(key, depth, dim, heads, mlp_dim):
    dh = dim // heads
    params = []
    for _ in range(depth):
        key, *ks = jax.random.split(key, 7)
        wqkv = 0.05 * jax.random.normal(ks[0], (dim, 3 * dim), jnp.float32)
        wq, wk, wv = wqkv[:, :dim], wqkv[:, dim:2 * dim], wqkv[:, 2 * dim:]
        wo = 0.05 * jax.random.normal(ks[1], (dim, dim), jnp.float32)
        params.append({
            "ln0_g": jnp.ones((1, dim), jnp.float32),
            "ln0_b": jnp.zeros((1, dim), jnp.float32),
            # (out_features, in_features): the A.B^T projection puts the
            # head-major output channel on sublanes (free per-head reshape).
            "wq_t": wq.T.astype(jnp.bfloat16),
            "wk_t": wk.T.astype(jnp.bfloat16),
            "wv_t": wv.T.astype(jnp.bfloat16),
            # output projection split per head: (H, dh, D)
            "wo_h": wo.reshape(heads, dh, dim).astype(jnp.bfloat16),
            "bo": 0.01 * jax.random.normal(ks[2], (1, dim), jnp.float32),
            "ln1_g": jnp.ones((1, dim), jnp.float32),
            "ln1_b": jnp.zeros((1, dim), jnp.float32),
            "w1": (0.05 * jax.random.normal(ks[3], (dim, mlp_dim),
                                            jnp.float32)).astype(jnp.bfloat16),
            "b1": 0.01 * jax.random.normal(ks[4], (1, mlp_dim), jnp.float32),
            "w2": (0.05 * jax.random.normal(ks[5], (mlp_dim, dim),
                                            jnp.float32)).astype(jnp.bfloat16),
            "b2": jnp.zeros((1, dim), jnp.float32),
        })
    return params


# ----------------------------------------------------------------------------
if __name__ == "__main__":
    # Small shapes consistent with the module's forward: x is (b, n, dim).
    B, N, DIM, HEADS, MLP_DIM, DEPTH = 2, 8, 32, 4, 64, 2

    key = jax.random.PRNGKey(0)
    kx, kp = jax.random.split(key)
    x = jax.random.normal(kx, (B, N, DIM), jnp.float32)
    params = init_params(kp, DEPTH, DIM, HEADS, MLP_DIM)

    # Path 1: attention probabilities returned (f32, matches module semantics).
    out, attns = transformer_forward(x, params, HEADS, return_attn=True)
    out = jax.block_until_ready(out)
    attns = [jax.block_until_ready(a) for a in attns]

    ref_out, ref_attns = transformer_reference(x, params, HEADS)

    assert out.shape == (B, N, DIM)
    assert all(a.shape == (B, HEADS, N, N) for a in attns)
    # bf16 matmuls + approx reciprocal -> compare against the f32 reference
    # with mixed-precision tolerances.
    assert jnp.allclose(out, ref_out, atol=3e-2, rtol=3e-2), \
        float(jnp.max(jnp.abs(out - ref_out)))
    for a, ra in zip(attns, ref_attns):
        assert jnp.allclose(a, ra, atol=1e-2, rtol=1e-2)

    # Path 2: attention output dropped (inference fast path: unnormalized-p PV).
    out2, attns2 = transformer_forward(x, params, HEADS, return_attn=False)
    out2 = jax.block_until_ready(out2)
    assert all(a is None for a in attns2)
    assert jnp.allclose(out2, ref_out, atol=3e-2, rtol=3e-2), \
        float(jnp.max(jnp.abs(out2 - ref_out)))

    print("KERNEL_OK")
</pallas_src>

<mosaic_0001>
module attributes {stable_mosaic.version = 11 : i64} {
  func.func @qkv_kernel(%arg0: i32, %arg1: i32, %arg2: memref<1x8x32xf32, #tpu.memory_space<vmem>>, %arg3: memref<1x32xf32, #tpu.memory_space<vmem>>, %arg4: memref<1x32xf32, #tpu.memory_space<vmem>>, %arg5: memref<32x32xbf16, #tpu.memory_space<vmem>>, %arg6: memref<32x32xbf16, #tpu.memory_space<vmem>>, %arg7: memref<32x32xbf16, #tpu.memory_space<vmem>>, %arg8: memref<1x4x8x8xbf16, #tpu.memory_space<vmem>>, %arg9: memref<1x4x8x8xbf16, #tpu.memory_space<vmem>>, %arg10: memref<1x4x8x8xbf16, #tpu.memory_space<vmem>>) attributes {dimension_semantics = [#tpu.dimension_semantics<parallel>, #tpu.dimension_semantics<parallel>], iteration_bounds = array<i64: 2, 1>, scalar_prefetch = 0 : i64, scratch_operands = 0 : i64, tpu.core_type = #tpu.core_type<tc>, window_params = [{transform_indices = @transform_0, window_bounds = array<i64: 1, 8, 32>}, {pipeline_mode = #tpu.pipeline_mode<synchronous>, transform_indices = @transform_1, window_bounds = array<i64: 1, 32>}, {pipeline_mode = #tpu.pipeline_mode<synchronous>, transform_indices = @transform_2, window_bounds = array<i64: 1, 32>}, {pipeline_mode = #tpu.pipeline_mode<synchronous>, transform_indices = @transform_3, window_bounds = array<i64: 32, 32>}, {pipeline_mode = #tpu.pipeline_mode<synchronous>, transform_indices = @transform_4, window_bounds = array<i64: 32, 32>}, {pipeline_mode = #tpu.pipeline_mode<synchronous>, transform_indices = @transform_5, window_bounds = array<i64: 32, 32>}, {transform_indices = @transform_6, window_bounds = array<i64: 1, 4, 8, 8>}, {transform_indices = @transform_7, window_bounds = array<i64: 1, 4, 8, 8>}, {transform_indices = @transform_8, window_bounds = array<i64: 1, 4, 8, 8>}]} {
    %c0 = arith.constant 0 : index
    %c0_0 = arith.constant 0 : index
    %c0_1 = arith.constant 0 : index
    %0 = vector.load %arg2[%c0, %c0_0, %c0_1] : memref<1x8x32xf32, #tpu.memory_space<vmem>>, vector<1x8x32xf32>
    %1 = vector.shape_cast %0 : vector<1x8x32xf32> to vector<8x32xf32>
    %c0_2 = arith.constant 0 : index
    %c0_3 = arith.constant 0 : index
    %2 = vector.load %arg3[%c0_2, %c0_3] : memref<1x32xf32, #tpu.memory_space<vmem>>, vector<1x32xf32>
    %3 = vector.shape_cast %2 : vector<1x32xf32> to vector<32xf32>
    %c0_4 = arith.constant 0 : index
    %c0_5 = arith.constant 0 : index
    %4 = vector.load %arg4[%c0_4, %c0_5] : memref<1x32xf32, #tpu.memory_space<vmem>>, vector<1x32xf32>
    %5 = vector.shape_cast %4 : vector<1x32xf32> to vector<32xf32>
    %cst = arith.constant dense<0.000000e+00> : vector<8xf32>
    %6 = vector.multi_reduction <add>, %1, %cst [1] : vector<8x32xf32> to vector<8xf32>
    %7 = vector.shape_cast %6 : vector<8xf32> to vector<8x1xf32>
    %cst_6 = arith.constant 3.200000e+01 : f32
    %8 = vector.broadcast %cst_6 : f32 to vector<8x1xf32>
    %9 = arith.divf %7, %8 : vector<8x1xf32>
    %10 = vector.broadcast %9 : vector<8x1xf32> to vector<8x32xf32>
    %11 = arith.subf %1, %10 : vector<8x32xf32>
    %12 = arith.mulf %11, %11 : vector<8x32xf32>
    %cst_7 = arith.constant dense<0.000000e+00> : vector<8xf32>
    %13 = vector.multi_reduction <add>, %12, %cst_7 [1] : vector<8x32xf32> to vector<8xf32>
    %14 = vector.shape_cast %13 : vector<8xf32> to vector<8x1xf32>
    %cst_8 = arith.constant 3.200000e+01 : f32
    %15 = vector.broadcast %cst_8 : f32 to vector<8x1xf32>
    %16 = arith.divf %14, %15 : vector<8x1xf32>
    %17 = vector.broadcast %9 : vector<8x1xf32> to vector<8x32xf32>
    %18 = arith.subf %1, %17 : vector<8x32xf32>
    %cst_9 = arith.constant 9.99999974E-6 : f32
    %19 = vector.broadcast %cst_9 : f32 to vector<8x1xf32>
    %20 = arith.addf %16, %19 : vector<8x1xf32>
    %21 = math.rsqrt %20 : vector<8x1xf32>
    %22 = vector.broadcast %21 : vector<8x1xf32> to vector<8x32xf32>
    %23 = arith.mulf %18, %22 : vector<8x32xf32>
    %24 = vector.shape_cast %3 : vector<32xf32> to vector<1x32xf32>
    %25 = vector.broadcast %24 : vector<1x32xf32> to vector<8x32xf32>
    %26 = arith.mulf %23, %25 : vector<8x32xf32>
    %27 = vector.shape_cast %5 : vector<32xf32> to vector<1x32xf32>
    %28 = vector.broadcast %27 : vector<1x32xf32> to vector<8x32xf32>
    %29 = arith.addf %26, %28 : vector<8x32xf32>
    %30 = arith.truncf %29 : vector<8x32xf32> to vector<8x32xbf16>
    %c0_10 = arith.constant 0 : index
    %c0_11 = arith.constant 0 : index
    %31 = vector.load %arg5[%c0_10, %c0_11] : memref<32x32xbf16, #tpu.memory_space<vmem>>, vector<32x32xbf16>
    %cst_12 = arith.constant dense<0.000000e+00> : vector<32x8xf32>
    %32 = tpu.matmul %31, %30, %cst_12 {dimension_numbers = #tpu.dot_dimension_numbers<[1], [1], [0], [0], [0, 0, 1, 0], [], []>} : vector<32x32xbf16>, vector<8x32xbf16>, vector<32x8xf32> -> vector<32x8xf32>
    %cst_13 = arith.constant 0.176776692 : f32
    %33 = vector.broadcast %cst_13 : f32 to vector<32x8xf32>
    %34 = arith.mulf %32, %33 : vector<32x8xf32>
    %35 = vector.shape_cast %34 : vector<32x8xf32> to vector<4x8x8xf32>
    %36 = tpu.transpose %35, [0, 2, 1] : vector<4x8x8xf32> -> vector<4x8x8xf32>
    %37 = arith.truncf %36 : vector<4x8x8xf32> to vector<4x8x8xbf16>
    %c0_14 = arith.constant 0 : index
    %c0_15 = arith.constant 0 : index
    %c0_16 = arith.constant 0 : index
    %c0_17 = arith.constant 0 : index
    %38 = vector.load %arg8[%c0_14, %c0_15, %c0_16, %c0_17] : memref<1x4x8x8xbf16, #tpu.memory_space<vmem>>, vector<1x4x8x8xbf16>
    %39 = vector.shape_cast %38 : vector<1x4x8x8xbf16> to vector<4x8x8xbf16>
    %40 = vector.shape_cast %37 : vector<4x8x8xbf16> to vector<1x4x8x8xbf16>
    tpu.vector_store %arg8[%c0_14, %c0_15, %c0_16, %c0_17], %40 {strides = array<i32>} : memref<1x4x8x8xbf16, #tpu.memory_space<vmem>>, vector<1x4x8x8xbf16>,
    %c0_18 = arith.constant 0 : index
    %c0_19 = arith.constant 0 : index
    %41 = vector.load %arg6[%c0_18, %c0_19] : memref<32x32xbf16, #tpu.memory_space<vmem>>, vector<32x32xbf16>
    %cst_20 = arith.constant dense<0.000000e+00> : vector<32x8xf32>
    %42 = tpu.matmul %41, %30, %cst_20 {dimension_numbers = #tpu.dot_dimension_numbers<[1], [1], [0], [0], [0, 0, 1, 0], [], []>} : vector<32x32xbf16>, vector<8x32xbf16>, vector<32x8xf32> -> vector<32x8xf32>
    %43 = vector.shape_cast %42 : vector<32x8xf32> to vector<4x8x8xf32>
    %44 = tpu.transpose %43, [0, 2, 1] : vector<4x8x8xf32> -> vector<4x8x8xf32>
    %45 = arith.truncf %44 : vector<4x8x8xf32> to vector<4x8x8xbf16>
    %c0_21 = arith.constant 0 : index
    %c0_22 = arith.constant 0 : index
    %c0_23 = arith.constant 0 : index
    %c0_24 = arith.constant 0 : index
    %46 = vector.load %arg9[%c0_21, %c0_22, %c0_23, %c0_24] : memref<1x4x8x8xbf16, #tpu.memory_space<vmem>>, vector<1x4x8x8xbf16>
    %47 = vector.shape_cast %46 : vector<1x4x8x8xbf16> to vector<4x8x8xbf16>
    %48 = vector.shape_cast %45 : vector<4x8x8xbf16> to vector<1x4x8x8xbf16>
    tpu.vector_store %arg9[%c0_21, %c0_22, %c0_23, %c0_24], %48 {strides = array<i32>} : memref<1x4x8x8xbf16, #tpu.memory_space<vmem>>, vector<1x4x8x8xbf16>,
    %c0_25 = arith.constant 0 : index
    %c0_26 = arith.constant 0 : index
    %49 = vector.load %arg7[%c0_25, %c0_26] : memref<32x32xbf16, #tpu.memory_space<vmem>>, vector<32x32xbf16>
    %cst_27 = arith.constant dense<0.000000e+00> : vector<32x8xf32>
    %50 = tpu.matmul %49, %30, %cst_27 {dimension_numbers = #tpu.dot_dimension_numbers<[1], [1], [0], [0], [0, 0, 1, 0], [], []>} : vector<32x32xbf16>, vector<8x32xbf16>, vector<32x8xf32> -> vector<32x8xf32>
    %51 = vector.shape_cast %50 : vector<32x8xf32> to vector<4x8x8xf32>
    %52 = tpu.transpose %51, [0, 2, 1] : vector<4x8x8xf32> -> vector<4x8x8xf32>
    %53 = arith.truncf %52 : vector<4x8x8xf32> to vector<4x8x8xbf16>
    %c0_28 = arith.constant 0 : index
    %c0_29 = arith.constant 0 : index
    %c0_30 = arith.constant 0 : index
    %c0_31 = arith.constant 0 : index
    %54 = vector.load %arg10[%c0_28, %c0_29, %c0_30, %c0_31] : memref<1x4x8x8xbf16, #tpu.memory_space<vmem>>, vector<1x4x8x8xbf16>
    %55 = vector.shape_cast %54 : vector<1x4x8x8xbf16> to vector<4x8x8xbf16>
    %56 = vector.shape_cast %53 : vector<4x8x8xbf16> to vector<1x4x8x8xbf16>
    tpu.vector_store %arg10[%c0_28, %c0_29, %c0_30, %c0_31], %56 {strides = array<i32>} : memref<1x4x8x8xbf16, #tpu.memory_space<vmem>>, vector<1x4x8x8xbf16>,
    return
  }
  func.func @transform_0(%arg0: i32, %arg1: i32) -> (i32, i32, i32) {
    %c0_i32 = arith.constant 0 : i32
    %c0_i32_0 = arith.constant 0 : i32
    return %arg0, %arg1, %c0_i32 : i32, i32, i32
  }
  func.func @transform_1(%arg0: i32, %arg1: i32) -> (i32, i32) {
    %c0_i32 = arith.constant 0 : i32
    %c0_i32_0 = arith.constant 0 : i32
    %c0_i32_1 = arith.constant 0 : i32
    return %c0_i32, %c0_i32_0 : i32, i32
  }
  func.func @transform_2(%arg0: i32, %arg1: i32) -> (i32, i32) {
    %c0_i32 = arith.constant 0 : i32
    %c0_i32_0 = arith.constant 0 : i32
    %c0_i32_1 = arith.constant 0 : i32
    return %c0_i32, %c0_i32_0 : i32, i32
  }
  func.func @transform_3(%arg0: i32, %arg1: i32) -> (i32, i32) {
    %c0_i32 = arith.constant 0 : i32
    %c0_i32_0 = arith.constant 0 : i32
    %c0_i32_1 = arith.constant 0 : i32
    return %c0_i32, %c0_i32_0 : i32, i32
  }
  func.func @transform_4(%arg0: i32, %arg1: i32) -> (i32, i32) {
    %c0_i32 = arith.constant 0 : i32
    %c0_i32_0 = arith.constant 0 : i32
    %c0_i32_1 = arith.constant 0 : i32
    return %c0_i32, %c0_i32_0 : i32, i32
  }
  func.func @transform_5(%arg0: i32, %arg1: i32) -> (i32, i32) {
    %c0_i32 = arith.constant 0 : i32
    %c0_i32_0 = arith.constant 0 : i32
    %c0_i32_1 = arith.constant 0 : i32
    return %c0_i32, %c0_i32_0 : i32, i32
  }
  func.func @transform_6(%arg0: i32, %arg1: i32) -> (i32, i32, i32, i32) {
    %c0_i32 = arith.constant 0 : i32
    %c0_i32_0 = arith.constant 0 : i32
    %c0_i32_1 = arith.constant 0 : i32
    return %arg0, %c0_i32, %arg1, %c0_i32_0 : i32, i32, i32, i32
  }
  func.func @transform_7(%arg0: i32, %arg1: i32) -> (i32, i32, i32, i32) {
    %c0_i32 = arith.constant 0 : i32
    %c0_i32_0 = arith.constant 0 : i32
    %c0_i32_1 = arith.constant 0 : i32
    return %arg0, %c0_i32, %arg1, %c0_i32_0 : i32, i32, i32, i32
  }
  func.func @transform_8(%arg0: i32, %arg1: i32) -> (i32, i32, i32, i32) {
    %c0_i32 = arith.constant 0 : i32
    %c0_i32_0 = arith.constant 0 : i32
    %c0_i32_1 = arith.constant 0 : i32
    return %arg0, %c0_i32, %arg1, %c0_i32_0 : i32, i32, i32, i32
  }
}

</mosaic_0001>

<llo_original>
// kernel: tpu_custom_call.1
$region0: #{tpu_custom_call.1}
  #allocation0 [shape = 'u32[]', space=smem, size = 0x4, offset = 0x4, fixed_abs, tag = 'smem constant byte address 0x4 - core index']
  #allocation1 [shape = 'u32[144,128]{1,0:T(1,128)}', space=vmem, size = 0x12000, scoped, tag = 'internal scratch']
  %s0 = inlined_call_operand.hbm [shape: f32[2,8,32], index: 0, kind: input, shape index: {}]
  %s1 = inlined_call_operand.vmem [shape: f32[1,32], index: 1, kind: input, shape index: {}]
  %s2 = inlined_call_operand.vmem [shape: f32[1,32], index: 2, kind: input, shape index: {}]
  %s3 = inlined_call_operand.hbm [shape: bf16[32,32], index: 3, kind: input, shape index: {}]
  %s4 = inlined_call_operand.hbm [shape: bf16[32,32], index: 4, kind: input, shape index: {}]
  %s5 = inlined_call_operand.hbm [shape: bf16[32,32], index: 5, kind: input, shape index: {}]
  %s6 = inlined_call_operand.hbm [shape: bf16[2,4,8,8], index: 6, kind: output, shape index: {0}]
  %s7 = inlined_call_operand.hbm [shape: bf16[2,4,8,8], index: 7, kind: output, shape index: {1}]
  %s8 = inlined_call_operand.hbm [shape: bf16[2,4,8,8], index: 8, kind: output, shape index: {2}]
  %9 = xla_tuple %s6, %s7, %s8
  %s10 = sld [smem:[#allocation0]]
  $region89: #{tpu_custom_call.1} parent=0
    _
  %s12 = ssub.s32 1, %s10
  %s13 = scalar_select 0, %s12, %s10
  $region1: #{tpu_custom_call.1} parent=0
    #allocation2 [shape = 'u8[8192]{0}', space=vmem, size = 0x2000, scoped, tag = 'input window, operand 0']
    #allocation3 [shape = 's32[2]{0}', space=sflag, size = 0x8, scoped, tag = 'scoped memory for tpu_custom_call.1']
    #allocation4 [shape = 's32[2]{0}', space=sflag, size = 0x8, scoped, tag = 'scoped memory for tpu_custom_call.1']
    #allocation5 [shape = 'u8[8192]{0}', space=vmem, size = 0x2000, scoped, tag = 'input window, operand 3, single buffered']
    #allocation6 [shape = 's32[1]{0}', space=sflag, size = 0x4, scoped, tag = 'scoped memory for tpu_custom_call.1']
    #allocation7 [shape = 'u8[8192]{0}', space=vmem, size = 0x2000, scoped, tag = 'input window, operand 4, single buffered']
    #allocation8 [shape = 'u8[8192]{0}', space=vmem, size = 0x2000, scoped, tag = 'input window, operand 5, single buffered']
    #allocation9 [shape = 's32[1]{0}', space=sflag, size = 0x4, scoped, tag = 'scoped memory for tpu_custom_call.1']
    #allocation10 [shape = 'u8[16384]{0}', space=vmem, size = 0x4000, scoped, tag = 'output window, operand 0']
    #allocation11 [shape = 'u8[16384]{0}', space=vmem, size = 0x4000, scoped, tag = 'output window, operand 1']
    #allocation12 [shape = 's32[2]{0}', space=sflag, size = 0x8, scoped, tag = 'scoped memory for tpu_custom_call.1']
    #allocation13 [shape = 'u8[16384]{0}', space=vmem, size = 0x4000, scoped, tag = 'output window, operand 2']
    %14 = vsyncpa [#allocation3], 0
    %s15 = scalar_lea.sflag [#allocation3], 1
    %16 = vsyncpa %s15, 0
    %17 = vsyncpa [#allocation6], 0
    %18 = vsyncpa [#allocation9], 0
    %19 = vsyncpa [#allocation4], 0
    %s20 = scalar_lea.sflag [#allocation4], 1
    %21 = vsyncpa %s20, 0
    %22 = vsyncpa [#allocation12], 0
    %s23 = scalar_lea.sflag [#allocation12], 1
    %24 = vsyncpa %s23, 0
    loop: start=0, step=1, limit=4
    $region2: #{tpu_custom_call.1} parent=1 // loop_pre_header
      _
    $region3: #{tpu_custom_call.1} parent=1 // loop_header
      %s26 = sphi 0, %s30
      %p27 = scmp.ge.s32.totalorder %s26, 4
      %s33 = sphi 0, %s45
      %s34 = sphi 0, %s41
      %s35 = sphi 0, %s33
      %s36 = sphi 0, %s34
      %s37 = sphi 0, %s35
      %s38 = sphi 0, %s36
      %s50 = sphi 0, %s52
      %s53 = sphi 0, %s50
      %s54 = sphi 0, %s53
      %s70 = sphi 0, %s54
      %s74 = sphi 0, %s74
      %s76 = sphi 0, %s74
      %s77 = sphi 0, %s76
      %s91 = sphi 0, %s77
      %s95 = sphi 0, %s95
      %s97 = sphi 0, %s95
      %s98 = sphi 0, %s97
      %s112 = sphi 0, %s98
      %s116 = sphi 0, %s116
      %s118 = sphi 0, %s116
      %s119 = sphi 0, %s118
      %s133 = sphi 0, %s119
      %s137 = sphi 0, %s137
      %s139 = sphi 0, %s137
      %s140 = sphi 0, %s139
      %s154 = sphi 0, %s140
      %s158 = sphi 0, %s158
      %s160 = sphi 0, %s158
      %s161 = sphi 0, %s160
      %s175 = sphi 0, %s161
      %s183 = sphi 0, %s185
      %s186 = sphi 0, %s183
      %s187 = sphi 0, %s186
      %s203 = sphi 0, %s187
      %s211 = sphi 0, %s213
      %s214 = sphi 0, %s211
      %s215 = sphi 0, %s214
      %s231 = sphi 0, %s215
      %s239 = sphi 0, %s241
      %s242 = sphi 0, %s239
      %s243 = sphi 0, %s242
      %s259 = sphi 0, %s243
    $region4: #{tpu_custom_call.1} parent=1 // loop_header_branch
      %29 = sbr.rel (%p27) target = $region8
    $region5: #{tpu_custom_call.1} parent=1 // loop_body
      %s31 = ssub.s32 %s26, 1
      %s32 = ssub.s32 %s26, 2
      %s39 = sadd.s32 1, %s34
      %p40 = scmp.ge.s32.totalorder %s39, 1
      %s41 = scalar_select %p40, 0, %s39
      %s42 = sadd.s32 1, %s33
      %s43 = scalar_select %p40, %s42, %s33
      %p44 = scmp.ge.s32.totalorder %s43, 2
      %s45 = scalar_select %p44, 0, %s43
      %s46 = ssub.s32 %s33, %s45
      %s47 = ssub.s32 %s34, %s41
      %s48 = sor.u32 %s46, %s47
      %p49 = scmp.eq.s32.totalorder %s48, 0
      %s51 = sadd.s32 %s50, 1
      %s52 = scalar_select %p49, %s50, %s51
      %p55 = pneg %p49
      %p56 = scmp.eq.s32.totalorder %s26, 1
      %p57 = por %p55, %p56
      %p58 = scmp.ne.s32.totalorder %s50, %s53
      %p59 = scmp.eq.s32.totalorder %s26, 0
      %p60 = por %p58, %p59
      %p61 = scmp.ne.s32.totalorder %s50, %s53
      %p62 = scmp.eq.s32.totalorder %s31, 1
      %p63 = por %p61, %p62
      %p64 = scmp.ne.s32.totalorder %s53, %s54
      %p65 = scmp.eq.s32.totalorder %s31, 0
      %p66 = por %p64, %p65
      %p67 = scmp.ne.s32.totalorder %s53, %s54
      %p68 = scmp.eq.s32.totalorder %s32, 1
      %p69 = por %p67, %p68
      %p71 = scmp.ne.s32.totalorder %s54, %s70
      %p72 = scmp.eq.s32.totalorder %s32, 0
      %p73 = por %p71, %p72
      %s75 = sadd.s32 %s74, 1
      %p78 = scmp.eq.s32.totalorder %s26, 1
      %p79 = scmp.ne.s32.totalorder %s74, %s76
      %p80 = scmp.eq.s32.totalorder %s26, 0
      %p81 = por %p79, %p80
      %p82 = scmp.ne.s32.totalorder %s74, %s76
      %p83 = scmp.eq.s32.totalorder %s31, 1
      %p84 = por %p82, %p83
      %p85 = scmp.ne.s32.totalorder %s76, %s77
      %p86 = scmp.eq.s32.totalorder %s31, 0
      %p87 = por %p85, %p86
      %p88 = scmp.ne.s32.totalorder %s76, %s77
      %p89 = scmp.eq.s32.totalorder %s32, 1
      %p90 = por %p88, %p89
      %p92 = scmp.ne.s32.totalorder %s77, %s91
      %p93 = scmp.eq.s32.totalorder %s32, 0
      %p94 = por %p92, %p93
      %s96 = sadd.s32 %s95, 1
      %p99 = scmp.eq.s32.totalorder %s26, 1
      %p100 = scmp.ne.s32.totalorder %s95, %s97
      %p101 = scmp.eq.s32.totalorder %s26, 0
      %p102 = por %p100, %p101
      %p103 = scmp.ne.s32.totalorder %s95, %s97
      %p104 = scmp.eq.s32.totalorder %s31, 1
      %p105 = por %p103, %p104
      %p106 = scmp.ne.s32.totalorder %s97, %s98
      %p107 = scmp.eq.s32.totalorder %s31, 0
      %p108 = por %p106, %p107
      %p109 = scmp.ne.s32.totalorder %s97, %s98
      %p110 = scmp.eq.s32.totalorder %s32, 1
      %p111 = por %p109, %p110
      %p113 = scmp.ne.s32.totalorder %s98, %s112
      %p114 = scmp.eq.s32.totalorder %s32, 0
      %p115 = por %p113, %p114
      %s117 = sadd.s32 %s116, 1
      %p120 = scmp.eq.s32.totalorder %s26, 1
      %p121 = scmp.ne.s32.totalorder %s116, %s118
      %p122 = scmp.eq.s32.totalorder %s26, 0
      %p123 = por %p121, %p122
      %p124 = scmp.ne.s32.totalorder %s116, %s118
      %p125 = scmp.eq.s32.totalorder %s31, 1
      %p126 = por %p124, %p125
      %p127 = scmp.ne.s32.totalorder %s118, %s119
      %p128 = scmp.eq.s32.totalorder %s31, 0
      %p129 = por %p127, %p128
      %p130 = scmp.ne.s32.totalorder %s118, %s119
      %p131 = scmp.eq.s32.totalorder %s32, 1
      %p132 = por %p130, %p131
      %p134 = scmp.ne.s32.totalorder %s119, %s133
      %p135 = scmp.eq.s32.totalorder %s32, 0
      %p136 = por %p134, %p135
      %s138 = sadd.s32 %s137, 1
      %p141 = scmp.eq.s32.totalorder %s26, 1
      %p142 = scmp.ne.s32.totalorder %s137, %s139
      %p143 = scmp.eq.s32.totalorder %s26, 0
      %p144 = por %p142, %p143
      %p145 = scmp.ne.s32.totalorder %s137, %s139
      %p146 = scmp.eq.s32.totalorder %s31, 1
      %p147 = por %p145, %p146
      %p148 = scmp.ne.s32.totalorder %s139, %s140
      %p149 = scmp.eq.s32.totalorder %s31, 0
      %p150 = por %p148, %p149
      %p151 = scmp.ne.s32.totalorder %s139, %s140
      %p152 = scmp.eq.s32.totalorder %s32, 1
      %p153 = por %p151, %p152
      %p155 = scmp.ne.s32.totalorder %s140, %s154
      %p156 = scmp.eq.s32.totalorder %s32, 0
      %p157 = por %p155, %p156
      %s159 = sadd.s32 %s158, 1
      %p162 = scmp.eq.s32.totalorder %s26, 1
      %p163 = scmp.ne.s32.totalorder %s158, %s160
      %p164 = scmp.eq.s32.totalorder %s26, 0
      %p165 = por %p163, %p164
      %p166 = scmp.ne.s32.totalorder %s158, %s160
      %p167 = scmp.eq.s32.totalorder %s31, 1
      %p168 = por %p166, %p167
      %p169 = scmp.ne.s32.totalorder %s160, %s161
      %p170 = scmp.eq.s32.totalorder %s31, 0
      %p171 = por %p169, %p170
      %p172 = scmp.ne.s32.totalorder %s160, %s161
      %p173 = scmp.eq.s32.totalorder %s32, 1
      %p174 = por %p172, %p173
      %p176 = scmp.ne.s32.totalorder %s161, %s175
      %p177 = scmp.eq.s32.totalorder %s32, 0
      %p178 = por %p176, %p177
      %s179 = ssub.s32 %s33, %s45
      %s180 = ssub.s32 %s34, %s41
      %s181 = sor.u32 %s179, %s180
      %p182 = scmp.eq.s32.totalorder %s181, 0
      %s184 = sadd.s32 %s183, 1
      %s185 = scalar_select %p182, %s183, %s184
      %p188 = pneg %p182
      %p189 = scmp.eq.s32.totalorder %s26, 1
      %p190 = por %p188, %p189
      %p191 = scmp.ne.s32.totalorder %s183, %s186
      %p192 = scmp.eq.s32.totalorder %s26, 0
      %p193 = por %p191, %p192
      %p194 = scmp.ne.s32.totalorder %s183, %s186
      %p195 = scmp.eq.s32.totalorder %s31, 1
      %p196 = por %p194, %p195
      %p197 = scmp.ne.s32.totalorder %s186, %s187
      %p198 = scmp.eq.s32.totalorder %s31, 0
      %p199 = por %p197, %p198
      %p200 = scmp.ne.s32.totalorder %s186, %s187
      %p201 = scmp.eq.s32.totalorder %s32, 1
      %p202 = por %p200, %p201
      %p204 = scmp.ne.s32.totalorder %s187, %s203
      %p205 = scmp.eq.s32.totalorder %s32, 0
      %p206 = por %p204, %p205
      %s207 = ssub.s32 %s33, %s45
      %s208 = ssub.s32 %s34, %s41
      %s209 = sor.u32 %s207, %s208
      %p210 = scmp.eq.s32.totalorder %s209, 0
      %s212 = sadd.s32 %s211, 1
      %s213 = scalar_select %p210, %s211, %s212
      %p216 = pneg %p210
      %p217 = scmp.eq.s32.totalorder %s26, 1
      %p218 = por %p216, %p217
      %p219 = scmp.ne.s32.totalorder %s211, %s214
      %p220 = scmp.eq.s32.totalorder %s26, 0
      %p221 = por %p219, %p220
      %p222 = scmp.ne.s32.totalorder %s211, %s214
      %p223 = scmp.eq.s32.totalorder %s31, 1
      %p224 = por %p222, %p223
      %p225 = scmp.ne.s32.totalorder %s214, %s215
      %p226 = scmp.eq.s32.totalorder %s31, 0
      %p227 = por %p225, %p226
      %p228 = scmp.ne.s32.totalorder %s214, %s215
      %p229 = scmp.eq.s32.totalorder %s32, 1
      %p230 = por %p228, %p229
      %p232 = scmp.ne.s32.totalorder %s215, %s231
      %p233 = scmp.eq.s32.totalorder %s32, 0
      %p234 = por %p232, %p233
      %s235 = ssub.s32 %s33, %s45
      %s236 = ssub.s32 %s34, %s41
      %s237 = sor.u32 %s235, %s236
      %p238 = scmp.eq.s32.totalorder %s237, 0
      %s240 = sadd.s32 %s239, 1
      %s241 = scalar_select %p238, %s239, %s240
      %p244 = pneg %p238
      %p245 = scmp.eq.s32.totalorder %s26, 1
      %p246 = por %p244, %p245
      %p247 = scmp.ne.s32.totalorder %s239, %s242
      %p248 = scmp.eq.s32.totalorder %s26, 0
      %p249 = por %p247, %p248
      %p250 = scmp.ne.s32.totalorder %s239, %s242
      %p251 = scmp.eq.s32.totalorder %s31, 1
      %p252 = por %p250, %p251
      %p253 = scmp.ne.s32.totalorder %s242, %s243
      %p254 = scmp.eq.s32.totalorder %s31, 0
      %p255 = por %p253, %p254
      %p256 = scmp.ne.s32.totalorder %s242, %s243
      %p257 = scmp.eq.s32.totalorder %s32, 1
      %p258 = por %p256, %p257
      %p260 = scmp.ne.s32.totalorder %s243, %s259
      %p261 = scmp.eq.s32.totalorder %s32, 0
      %p262 = por %p260, %p261
      %p263 = scmp.le.s32.totalorder 1, %s26
      %p264 = scmp.lt.s32.totalorder %s26, 3
      %p265 = pnand %p263, %p264
      %p266 = pneg %p265
      // Predicated region
      $region9: #{tpu_custom_call.1} parent=5 // pred_check
        _
      $region10: #{tpu_custom_call.1} parent=5 // pred_check_branch
        %268 = sbr.rel (%p265) target = $region12
      $region11: #{tpu_custom_call.1} parent=5 // pred_region
        %s269 = ssub.s32 %s26, 1
        // Predicated region
        $region13: #{tpu_custom_call.1} parent=11 // pred_check
          %p270 = pneg %p87
        $region14: #{tpu_custom_call.1} parent=11 // pred_check_branch
          %272 = sbr.rel (%p270) target = $region16
        $region15: #{tpu_custom_call.1} parent=11 // pred_region
          _
        $region16: #{tpu_custom_call.1} parent=11 // pred_fallthru
          _
        // Predicated region
        $region17: #{tpu_custom_call.1} parent=11 // pred_check
          %p273 = pneg %p108
        $region18: #{tpu_custom_call.1} parent=11 // pred_check_branch
          %275 = sbr.rel (%p273) target = $region20
        $region19: #{tpu_custom_call.1} parent=11 // pred_region
          _
        $region20: #{tpu_custom_call.1} parent=11 // pred_fallthru
          _
        // Predicated region
        $region21: #{tpu_custom_call.1} parent=11 // pred_check
          %p276 = pneg %p129
        $region22: #{tpu_custom_call.1} parent=11 // pred_check_branch
          %278 = sbr.rel (%p276) target = $region24
        $region23: #{tpu_custom_call.1} parent=11 // pred_region
          %s280 = ssub.s32 256, 256
          %281 = vsyncadd [#allocation6], %s280
          %s282 = sshll.u32 [#allocation5], 4
          %s283 = int_to_ptr.vmem [resolvable:$true] %s282
          %288 = dma.hbm_to_vmem [thread:$0]  %s3, 256, %s283, [#allocation6], 64, 64, 4
        $region24: #{tpu_custom_call.1} parent=11 // pred_fallthru
          _
        // Predicated region
        $region25: #{tpu_custom_call.1} parent=11 // pred_check
          %p289 = pneg %p150
        $region26: #{tpu_custom_call.1} parent=11 // pred_check_branch
          %291 = sbr.rel (%p289) target = $region28
        $region27: #{tpu_custom_call.1} parent=11 // pred_region
          %s293 = ssub.s32 256, 256
          %294 = vsyncadd [#allocation6], %s293
          %s295 = sshll.u32 [#allocation7], 4
          %s296 = int_to_ptr.vmem [resolvable:$true] %s295
          %301 = dma.hbm_to_vmem [thread:$0]  %s4, 256, %s296, [#allocation6], 64, 64, 4
        $region28: #{tpu_custom_call.1} parent=11 // pred_fallthru
          _
        // Predicated region
        $region29: #{tpu_custom_call.1} parent=11 // pred_check
          %p302 = pneg %p171
        $region30: #{tpu_custom_call.1} parent=11 // pred_check_branch
          %304 = sbr.rel (%p302) target = $region32
        $region31: #{tpu_custom_call.1} parent=11 // pred_region
          %s306 = ssub.s32 256, 256
          %307 = vsyncadd [#allocation9], %s306
          %s308 = sshll.u32 [#allocation8], 4
          %s309 = int_to_ptr.vmem [resolvable:$true] %s308
          %314 = dma.hbm_to_vmem [thread:$0]  %s5, 256, %s309, [#allocation9], 64, 64, 4
        $region32: #{tpu_custom_call.1} parent=11 // pred_fallthru
          _
      $region12: #{tpu_custom_call.1} parent=5 // pred_fallthru
        _
      %p315 = scmp.lt.s32.totalorder %s26, 2
      // Predicated region
      $region33: #{tpu_custom_call.1} parent=5 // pred_check
        %p316 = pneg %p315
      $region34: #{tpu_custom_call.1} parent=5 // pred_check_branch
        %318 = sbr.rel (%p316) target = $region36
      $region35: #{tpu_custom_call.1} parent=5 // pred_region
        // Predicated region
        $region37: #{tpu_custom_call.1} parent=35 // pred_check
          %p319 = pneg %p60
        $region38: #{tpu_custom_call.1} parent=35 // pred_check_branch
          %321 = sbr.rel (%p319) target = $region40
        $region39: #{tpu_custom_call.1} parent=35 // pred_region
          %s322 = sand.u32 %s50, 1
          %s323 = scalar_lea.sflag [#allocation3], %s322
          %s324 = sand.u32 %s50, 1
          %s325 = smul.addr %s324, 8
          %s326 = scalar_lea.vmem [#allocation2], %s325
          %s328 = ssub.s32 128, 128
          %329 = vsyncadd %s323, %s328
          %s330 = sadd.s32 %s34, %s33
          %s331 = smul.addr %s330, 128
          %s332 = scalar_lea.hbm %s0, %s331
          %s334 = sshll.u32 %s326, 4
          %s335 = int_to_ptr.vmem [resolvable:$true] %s334
          %337 = dma.hbm_to_vmem [thread:$0]  %s332, 128, %s335, %s323
        $region40: #{tpu_custom_call.1} parent=35 // pred_fallthru
          _
      $region36: #{tpu_custom_call.1} parent=5 // pred_fallthru
        _
      %p338 = scmp.le.s32.totalorder 1, %s26
      %p339 = scmp.lt.s32.totalorder %s26, 3
      %p340 = pnand %p338, %p339
      %p341 = pneg %p340
      // Predicated region
      $region41: #{tpu_custom_call.1} parent=5 // pred_check
        _
      $region42: #{tpu_custom_call.1} parent=5 // pred_check_branch
        %343 = sbr.rel (%p340) target = $region44
      $region43: #{tpu_custom_call.1} parent=5 // pred_region
        %s344 = ssub.s32 %s26, 1
        %s345 = sand.u32 %s53, 1
        %s346 = scalar_lea.sflag [#allocation3], %s345
        %s347 = sand.u32 %s53, 1
        %s348 = smul.addr %s347, 8
        %s349 = scalar_lea.vmem [#allocation2], %s348
        // Predicated region
        $region45: #{tpu_custom_call.1} parent=43 // pred_check
          %p350 = pneg %p66
        $region46: #{tpu_custom_call.1} parent=43 // pred_check_branch
          %352 = sbr.rel (%p350) target = $region48
        $region47: #{tpu_custom_call.1} parent=43 // pred_region
          %353 = dma.done %s346, 128
        $region48: #{tpu_custom_call.1} parent=43 // pred_fallthru
          _
        // Predicated region
        $region49: #{tpu_custom_call.1} parent=43 // pred_check
          %p354 = pneg %p129
        $region50: #{tpu_custom_call.1} parent=43 // pred_check_branch
          %356 = sbr.rel (%p354) target = $region52
        $region51: #{tpu_custom_call.1} parent=43 // pred_region
          %357 = dma.done [#allocation6], 256
        $region52: #{tpu_custom_call.1} parent=43 // pred_fallthru
          _
        // Predicated region
        $region53: #{tpu_custom_call.1} parent=43 // pred_check
          %p358 = pneg %p150
        $region54: #{tpu_custom_call.1} parent=43 // pred_check_branch
          %360 = sbr.rel (%p358) target = $region56
        $region55: #{tpu_custom_call.1} parent=43 // pred_region
          %361 = dma.done [#allocation6], 256
        $region56: #{tpu_custom_call.1} parent=43 // pred_fallthru
          _
        // Predicated region
        $region57: #{tpu_custom_call.1} parent=43 // pred_check
          %p362 = pneg %p171
        $region58: #{tpu_custom_call.1} parent=43 // pred_check_branch
          %364 = sbr.rel (%p362) target = $region60
        $region59: #{tpu_custom_call.1} parent=43 // pred_region
          %365 = dma.done [#allocation9], 256
        $region60: #{tpu_custom_call.1} parent=43 // pred_fallthru
          _
        %s366 = sand.u32 %s53, 1
        %s367 = scalar_lea.sflag [#allocation3], %s366
        %s368 = sand.u32 %s53, 1
        %s369 = smul.addr %s368, 8
        %s370 = scalar_lea.vmem [#allocation2], %s369
        %p371 = pneg %p66
        %p372 = pneg %p63
        %p373 = pneg %p87
        %p374 = pneg %p84
        %p375 = pneg %p108
        %p376 = pneg %p105
        %p377 = pneg %p129
        %p378 = pneg %p126
        %p379 = pneg %p150
        %p380 = pneg %p147
        %p381 = pneg %p171
        %p382 = pneg %p168
        %p383 = pneg %p199
        %p384 = pneg %p196
        %s385 = sand.u32 %s186, 1
        %s386 = scalar_lea.sflag [#allocation4], %s385
        %s387 = sand.u32 %s186, 1
        %s388 = smul.addr %s387, 16
        %s389 = scalar_lea.vmem [#allocation10], %s388
        %p390 = pneg %p227
        %p391 = pneg %p224
        %s392 = sand.u32 %s31, 1
        %s393 = scalar_lea.sflag [#allocation12], %s392
        %s394 = sand.u32 %s214, 1
        %s395 = smul.addr %s394, 16
        %s396 = scalar_lea.vmem [#allocation11], %s395
        %p397 = pneg %p255
        %p398 = pneg %p252
        %s399 = sand.u32 %s31, 1
        %s400 = scalar_lea.sflag [#allocation12], %s399
        %s401 = sand.u32 %s242, 1
        %s402 = smul.addr %s401, 16
        %s403 = scalar_lea.vmem [#allocation13], %s402
        %v405 = vld [vmem:[%s349] sm:$0xff]
        %v406 = vld [vmem:[%s1] sm:$0x1]
        %v407 = vld [vmem:[%s2] sm:$0x1]
        %vm408 = vcmask 261120
        %v409 = vsel %vm408, %v405, 0.0
        %410 = vadd.xlane.f32.xlu0 %v409
        %v411 = vpop.xlane.xlu0 %410
        %v412 = vrcp.pop 32.0
        %v413 = vmul.f32 %v411, %v412
        %v414 = vsub.f32 %v405, %v413
        %v415 = vmul.f32 %v414, %v414
        %v416 = vsel %vm408, %v415, 0.0
        %417 = vadd.xlane.f32.xlu0 %v416
        %v418 = vpop.xlane.xlu0 %417
        %v419 = vmul.f32 %v418, %v412
        %v420 = vadd.f32 %v419, 1e-05
        %v421 = vrsqrt.pop %v420
        %v422 = vmul.f32 %v414, %v421
        %v424 = vlaneseq
        %v425 = vshrl.u32 %v424, 7
        %v426 = vsub.s32 0, %v425
        %v427 = vrot.slane %v406, %v426
        %v429 = vmul.f32 %v422, %v427
        %v431 = vlaneseq
        %v432 = vshrl.u32 %v431, 7
        %v433 = vsub.s32 0, %v432
        %v434 = vrot.slane %v407, %v433
        %v436 = vadd.f32 %v429, %v434
        %v437 = vpack.c.bf16 %v436, %v436
        %v438 = vld [vmem:[#allocation5] sm:$0xf]
        %v439 = vld [vmem:[#allocation5 + $0x4] sm:$0xf]
        %v440 = vld [vmem:[#allocation5 + $0x8] sm:$0xf]
        %v441 = vld [vmem:[#allocation5 + $0xc] sm:$0xf]
        %v446 = vunpack.c.l.b16 %v438
        %v447 = vunpack.c.l.b16 %v439
        %v448 = vunpack.c.l.b16 %v440
        %v449 = vunpack.c.l.b16 %v441
        %v450 = vpack.c.b16 %v447, %v446
        %v451 = vpack.c.b16 %v449, %v448
        %v453 = vsel %vm408, %v450, 0
        %v456 = vsel %vm408, %v451, 0
        %v459 = vsel %vm408, %v437, 0
        %461 = vmatprep.subr.bf16.mxu0 0
        %462 = vmatpush1.bf16.xpose.msra.mxu0 0
        %463 = vmatprep.subr.bf16.mxu0 0
        %464 = vmatpush1.bf16.xpose.msra.mxu0 0
        %465 = vmatprep.subr.bf16.mxu0 0
        %466 = vmatpush1.bf16.xpose.msra.mxu0 0
        %467 = vmatprep.subr.bf16.mxu0 0
        %468 = vmatpush1.bf16.xpose.msra.mxu0 0
        %469 = vmatprep.subr.bf16.mxu0 0
        %470 = vmatpush1.bf16.xpose.msra.mxu0 0
        %471 = vmatprep.subr.bf16.mxu0 0
        %472 = vmatpush1.bf16.xpose.msra.mxu0 0
        %473 = vmatprep.subr.bf16.mxu0 0
        %474 = vmatpush1.bf16.xpose.msra.mxu0 0
        %475 = vmatprep.subr.bf16.mxu0 0
        %476 = vmatpush1.bf16.xpose.msra.mxu0 %v459
        %477 = vmatprep.subr.bf16.mxu0 0
        %478 = vmatpush2.bf16.xpose.msra.mxu0 0
        %479 = vmatprep.subr.bf16.mxu0 0
        %480 = vmatpush2.bf16.xpose.msra.mxu0 0
        %481 = vmatprep.subr.bf16.mxu0 0
        %482 = vmatpush2.bf16.xpose.msra.mxu0 0
        %483 = vmatprep.subr.bf16.mxu0 0
        %484 = vmatpush2.bf16.xpose.msra.mxu0 0
        %485 = vmatprep.subr.bf16.mxu0 0
        %486 = vmatpush2.bf16.xpose.msra.mxu0 0
        %487 = vmatprep.subr.bf16.mxu0 0
        %488 = vmatpush2.bf16.xpose.msra.mxu0 0
        %489 = vmatprep.subr.bf16.mxu0 0
        %490 = vmatpush2.bf16.xpose.msra.mxu0 0
        %491 = vmatprep.subr.bf16.mxu0 0
        %492 = vmatpush2.bf16.xpose.msra.mxu0 0
        %493 = vmatprep.mubr.bf16.mxu0 0
        %494 = vmatmul.mubr.bf16.gmra.mxu0 %v453
        %v495 = vpop.f32.mrf.mxu0
        %v496 = vadd.f32 0.0, %v495
        %v497 = vpop.f32.mrf.mxu0
        %v498 = vpop.f32.mrf.mxu0
        %v499 = vadd.f32 0.0, %v498
        %v500 = vpop.f32.mrf.mxu0
        %501 = vmatprep.mubr.bf16.mxu0 0
        %502 = vmatmul.mubr.bf16.gmra.mxu0 %v456
        %v503 = vpop.f32.mrf.mxu0
        %v504 = vadd.f32 0.0, %v503
        %v505 = vpop.f32.mrf.mxu0
        %v506 = vpop.f32.mrf.mxu0
        %v507 = vadd.f32 0.0, %v506
        %v508 = vpop.f32.mrf.mxu0
        %509 = vdwg.mxu0
        %v510 = vmul.f32 %v496, 0.17677669
        %v511 = vmul.f32 %v499, 0.17677669
        %v512 = vmul.f32 %v504, 0.17677669
        %v513 = vmul.f32 %v507, 0.17677669
        %514 = vxpose.xlu0.b32.start [1/16] %v510, 128
        %515 = vxpose.xlu0.b32.cont [2/16] 0.0, 128
        %516 = vxpose.xlu0.b32.cont [3/16] 0.0, 128
        %517 = vxpose.xlu0.b32.cont [4/16] 0.0, 128
        %518 = vxpose.xlu0.b32.cont [5/16] 0.0, 128
        %519 = vxpose.xlu0.b32.cont [6/16] 0.0, 128
        %520 = vxpose.xlu0.b32.cont [7/16] 0.0, 128
        %521 = vxpose.xlu0.b32.cont [8/16] 0.0, 128
        %522 = vxpose.xlu0.b32.cont [9/16] 0.0, 128
        %523 = vxpose.xlu0.b32.cont [10/16] 0.0, 128
        %524 = vxpose.xlu0.b32.cont [11/16] 0.0, 128
        %525 = vxpose.xlu0.b32.cont [12/16] 0.0, 128
        %526 = vxpose.xlu0.b32.cont [13/16] 0.0, 128
        %527 = vxpose.xlu0.b32.cont [14/16] 0.0, 128
        %528 = vxpose.xlu0.b32.cont [15/16] 0.0, 128
        %529 = vxpose.xlu0.b32.end [16/16] 0.0, 128
        %v530 = vpop.trf.xlu0
        %v531 = vpop.trf.xlu0
        %v532 = vpop.trf.xlu0
        %v533 = vpop.trf.xlu0
        %v534 = vpop.trf.xlu0
        %v535 = vpop.trf.xlu0
        %v536 = vpop.trf.xlu0
        %v537 = vpop.trf.xlu0
        %v538 = vpop.trf.xlu0
        %v539 = vpop.trf.xlu0
        %v540 = vpop.trf.xlu0
        %v541 = vpop.trf.xlu0
        %v542 = vpop.trf.xlu0
        %v543 = vpop.trf.xlu0
        %v544 = vpop.trf.xlu0
        %v545 = vpop.trf.xlu0
        %546 = vxpose.xlu0.b32.start [1/16] %v511, 128
        %547 = vxpose.xlu0.b32.cont [2/16] 0.0, 128
        %548 = vxpose.xlu0.b32.cont [3/16] 0.0, 128
        %549 = vxpose.xlu0.b32.cont [4/16] 0.0, 128
        %550 = vxpose.xlu0.b32.cont [5/16] 0.0, 128
        %551 = vxpose.xlu0.b32.cont [6/16] 0.0, 128
        %552 = vxpose.xlu0.b32.cont [7/16] 0.0, 128
        %553 = vxpose.xlu0.b32.cont [8/16] 0.0, 128
        %554 = vxpose.xlu0.b32.cont [9/16] 0.0, 128
        %555 = vxpose.xlu0.b32.cont [10/16] 0.0, 128
        %556 = vxpose.xlu0.b32.cont [11/16] 0.0, 128
        %557 = vxpose.xlu0.b32.cont [12/16] 0.0, 128
        %558 = vxpose.xlu0.b32.cont [13/16] 0.0, 128
        %559 = vxpose.xlu0.b32.cont [14/16] 0.0, 128
        %560 = vxpose.xlu0.b32.cont [15/16] 0.0, 128
        %561 = vxpose.xlu0.b32.end [16/16] 0.0, 128
        %v562 = vpop.trf.xlu0
        %v563 = vpop.trf.xlu0
        %v564 = vpop.trf.xlu0
        %v565 = vpop.trf.xlu0
        %v566 = vpop.trf.xlu0
        %v567 = vpop.trf.xlu0
        %v568 = vpop.trf.xlu0
        %v569 = vpop.trf.xlu0
        %v570 = vpop.trf.xlu0
        %v571 = vpop.trf.xlu0
        %v572 = vpop.trf.xlu0
        %v573 = vpop.trf.xlu0
        %v574 = vpop.trf.xlu0
        %v575 = vpop.trf.xlu0
        %v576 = vpop.trf.xlu0
        %v577 = vpop.trf.xlu0
        %578 = vxpose.xlu0.b32.start [1/16] %v512, 128
        %579 = vxpose.xlu0.b32.cont [2/16] 0.0, 128
        %580 = vxpose.xlu0.b32.cont [3/16] 0.0, 128
        %581 = vxpose.xlu0.b32.cont [4/16] 0.0, 128
        %582 = vxpose.xlu0.b32.cont [5/16] 0.0, 128
        %583 = vxpose.xlu0.b32.cont [6/16] 0.0, 128
        %584 = vxpose.xlu0.b32.cont [7/16] 0.0, 128
        %585 = vxpose.xlu0.b32.cont [8/16] 0.0, 128
        %586 = vxpose.xlu0.b32.cont [9/16] 0.0, 128
        %587 = vxpose.xlu0.b32.cont [10/16] 0.0, 128
        %588 = vxpose.xlu0.b32.cont [11/16] 0.0, 128
        %589 = vxpose.xlu0.b32.cont [12/16] 0.0, 128
        %590 = vxpose.xlu0.b32.cont [13/16] 0.0, 128
        %591 = vxpose.xlu0.b32.cont [14/16] 0.0, 128
        %592 = vxpose.xlu0.b32.cont [15/16] 0.0, 128
        %593 = vxpose.xlu0.b32.end [16/16] 0.0, 128
        %v594 = vpop.trf.xlu0
        %v595 = vpop.trf.xlu0
        %v596 = vpop.trf.xlu0
        %v597 = vpop.trf.xlu0
        %v598 = vpop.trf.xlu0
        %v599 = vpop.trf.xlu0
        %v600 = vpop.trf.xlu0
        %v601 = vpop.trf.xlu0
        %v602 = vpop.trf.xlu0
        %v603 = vpop.trf.xlu0
        %v604 = vpop.trf.xlu0
        %v605 = vpop.trf.xlu0
        %v606 = vpop.trf.xlu0
        %v607 = vpop.trf.xlu0
        %v608 = vpop.trf.xlu0
        %v609 = vpop.trf.xlu0
        %610 = vxpose.xlu0.b32.start [1/16] %v513, 128
        %611 = vxpose.xlu0.b32.cont [2/16] 0.0, 128
        %612 = vxpose.xlu0.b32.cont [3/16] 0.0, 128
        %613 = vxpose.xlu0.b32.cont [4/16] 0.0, 128
        %614 = vxpose.xlu0.b32.cont [5/16] 0.0, 128
        %615 = vxpose.xlu0.b32.cont [6/16] 0.0, 128
        %616 = vxpose.xlu0.b32.cont [7/16] 0.0, 128
        %617 = vxpose.xlu0.b32.cont [8/16] 0.0, 128
        %618 = vxpose.xlu0.b32.cont [9/16] 0.0, 128
        %619 = vxpose.xlu0.b32.cont [10/16] 0.0, 128
        %620 = vxpose.xlu0.b32.cont [11/16] 0.0, 128
        %621 = vxpose.xlu0.b32.cont [12/16] 0.0, 128
        %622 = vxpose.xlu0.b32.cont [13/16] 0.0, 128
        %623 = vxpose.xlu0.b32.cont [14/16] 0.0, 128
        %624 = vxpose.xlu0.b32.cont [15/16] 0.0, 128
        %625 = vxpose.xlu0.b32.end [16/16] 0.0, 128
        %v626 = vpop.trf.xlu0
        %v627 = vpop.trf.xlu0
        %v628 = vpop.trf.xlu0
        %v629 = vpop.trf.xlu0
        %v630 = vpop.trf.xlu0
        %v631 = vpop.trf.xlu0
        %v632 = vpop.trf.xlu0
        %v633 = vpop.trf.xlu0
        %v634 = vpop.trf.xlu0
        %v635 = vpop.trf.xlu0
        %v636 = vpop.trf.xlu0
        %v637 = vpop.trf.xlu0
        %v638 = vpop.trf.xlu0
        %v639 = vpop.trf.xlu0
        %v640 = vpop.trf.xlu0
        %v641 = vpop.trf.xlu0
        %v642 = vpack.c.bf16 %v530, %v530
        %v643 = vpack.c.bf16 %v562, %v562
        %v644 = vpack.c.bf16 %v594, %v594
        %v645 = vpack.c.bf16 %v626, %v626
        %vm646 = vcmask 60416
        %647 = vst.msk [vmem:[%s389] sm:$0xf] %vm646, %v642
        %648 = vst.msk [vmem:[%s389 + $0x4] sm:$0xf] %vm646, %v643
        %649 = vst.msk [vmem:[%s389 + $0x8] sm:$0xf] %vm646, %v644
        %650 = vst.msk [vmem:[%s389 + $0xc] sm:$0xf] %vm646, %v645
        %v651 = vld [vmem:[#allocation7] sm:$0xf]
        %v652 = vld [vmem:[#allocation7 + $0x4] sm:$0xf]
        %v653 = vld [vmem:[#allocation7 + $0x8] sm:$0xf]
        %v654 = vld [vmem:[#allocation7 + $0xc] sm:$0xf]
        %v659 = vunpack.c.l.b16 %v651
        %v660 = vunpack.c.l.b16 %v652
        %v661 = vunpack.c.l.b16 %v653
        %v662 = vunpack.c.l.b16 %v654
        %v663 = vpack.c.b16 %v660, %v659
        %v664 = vpack.c.b16 %v662, %v661
        %v666 = vsel %vm408, %v663, 0
        %v669 = vsel %vm408, %v664, 0
        %671 = vmatprep.subr.bf16.mxu0 0
        %672 = vmatpush1.bf16.xpose.msra.mxu0 0
        %673 = vmatprep.subr.bf16.mxu0 0
        %674 = vmatpush1.bf16.xpose.msra.mxu0 0
        %675 = vmatprep.subr.bf16.mxu0 0
        %676 = vmatpush1.bf16.xpose.msra.mxu0 0
        %677 = vmatprep.subr.bf16.mxu0 0
        %678 = vmatpush1.bf16.xpose.msra.mxu0 0
        %679 = vmatprep.subr.bf16.mxu0 0
        %680 = vmatpush1.bf16.xpose.msra.mxu0 0
        %681 = vmatprep.subr.bf16.mxu0 0
        %682 = vmatpush1.bf16.xpose.msra.mxu0 0
        %683 = vmatprep.subr.bf16.mxu0 0
        %684 = vmatpush1.bf16.xpose.msra.mxu0 0
        %685 = vmatprep.subr.bf16.mxu0 0
        %686 = vmatpush1.bf16.xpose.msra.mxu0 %v459
        %687 = vmatprep.subr.bf16.mxu0 0
        %688 = vmatpush2.bf16.xpose.msra.mxu0 0
        %689 = vmatprep.subr.bf16.mxu0 0
        %690 = vmatpush2.bf16.xpose.msra.mxu0 0
        %691 = vmatprep.subr.bf16.mxu0 0
        %692 = vmatpush2.bf16.xpose.msra.mxu0 0
        %693 = vmatprep.subr.bf16.mxu0 0
        %694 = vmatpush2.bf16.xpose.msra.mxu0 0
        %695 = vmatprep.subr.bf16.mxu0 0
        %696 = vmatpush2.bf16.xpose.msra.mxu0 0
        %697 = vmatprep.subr.bf16.mxu0 0
        %698 = vmatpush2.bf16.xpose.msra.mxu0 0
        %699 = vmatprep.subr.bf16.mxu0 0
        %700 = vmatpush2.bf16.xpose.msra.mxu0 0
        %701 = vmatprep.subr.bf16.mxu0 0
        %702 = vmatpush2.bf16.xpose.msra.mxu0 0
        %703 = vmatprep.mubr.bf16.mxu0 0
        %704 = vmatmul.mubr.bf16.gmra.mxu0 %v666
        %v705 = vpop.f32.mrf.mxu0
        %v706 = vadd.f32 0.0, %v705
        %v707 = vpop.f32.mrf.mxu0
        %v708 = vpop.f32.mrf.mxu0
        %v709 = vadd.f32 0.0, %v708
        %v710 = vpop.f32.mrf.mxu0
        %711 = vmatprep.mubr.bf16.mxu0 0
        %712 = vmatmul.mubr.bf16.gmra.mxu0 %v669
        %v713 = vpop.f32.mrf.mxu0
        %v714 = vadd.f32 0.0, %v713
        %v715 = vpop.f32.mrf.mxu0
        %v716 = vpop.f32.mrf.mxu0
        %v717 = vadd.f32 0.0, %v716
        %v718 = vpop.f32.mrf.mxu0
        %719 = vdwg.mxu0
        %720 = vxpose.xlu0.b32.start [1/16] %v706, 128
        %721 = vxpose.xlu0.b32.cont [2/16] 0.0, 128
        %722 = vxpose.xlu0.b32.cont [3/16] 0.0, 128
        %723 = vxpose.xlu0.b32.cont [4/16] 0.0, 128
        %724 = vxpose.xlu0.b32.cont [5/16] 0.0, 128
        %725 = vxpose.xlu0.b32.cont [6/16] 0.0, 128
        %726 = vxpose.xlu0.b32.cont [7/16] 0.0, 128
        %727 = vxpose.xlu0.b32.cont [8/16] 0.0, 128
        %728 = vxpose.xlu0.b32.cont [9/16] 0.0, 128
        %729 = vxpose.xlu0.b32.cont [10/16] 0.0, 128
        %730 = vxpose.xlu0.b32.cont [11/16] 0.0, 128
        %731 = vxpose.xlu0.b32.cont [12/16] 0.0, 128
        %732 = vxpose.xlu0.b32.cont [13/16] 0.0, 128
        %733 = vxpose.xlu0.b32.cont [14/16] 0.0, 128
        %734 = vxpose.xlu0.b32.cont [15/16] 0.0, 128
        %735 = vxpose.xlu0.b32.end [16/16] 0.0, 128
        %v736 = vpop.trf.xlu0
        %v737 = vpop.trf.xlu0
        %v738 = vpop.trf.xlu0
        %v739 = vpop.trf.xlu0
        %v740 = vpop.trf.xlu0
        %v741 = vpop.trf.xlu0
        %v742 = vpop.trf.xlu0
        %v743 = vpop.trf.xlu0
        %v744 = vpop.trf.xlu0
        %v745 = vpop.trf.xlu0
        %v746 = vpop.trf.xlu0
        %v747 = vpop.trf.xlu0
        %v748 = vpop.trf.xlu0
        %v749 = vpop.trf.xlu0
        %v750 = vpop.trf.xlu0
        %v751 = vpop.trf.xlu0
        %752 = vxpose.xlu0.b32.start [1/16] %v709, 128
        %753 = vxpose.xlu0.b32.cont [2/16] 0.0, 128
        %754 = vxpose.xlu0.b32.cont [3/16] 0.0, 128
        %755 = vxpose.xlu0.b32.cont [4/16] 0.0, 128
        %756 = vxpose.xlu0.b32.cont [5/16] 0.0, 128
        %757 = vxpose.xlu0.b32.cont [6/16] 0.0, 128
        %758 = vxpose.xlu0.b32.cont [7/16] 0.0, 128
        %759 = vxpose.xlu0.b32.cont [8/16] 0.0, 128
        %760 = vxpose.xlu0.b32.cont [9/16] 0.0, 128
        %761 = vxpose.xlu0.b32.cont [10/16] 0.0, 128
        %762 = vxpose.xlu0.b32.cont [11/16] 0.0, 128
        %763 = vxpose.xlu0.b32.cont [12/16] 0.0, 128
        %764 = vxpose.xlu0.b32.cont [13/16] 0.0, 128
        %765 = vxpose.xlu0.b32.cont [14/16] 0.0, 128
        %766 = vxpose.xlu0.b32.cont [15/16] 0.0, 128
        %767 = vxpose.xlu0.b32.end [16/16] 0.0, 128
        %v768 = vpop.trf.xlu0
        %v769 = vpop.trf.xlu0
        %v770 = vpop.trf.xlu0
        %v771 = vpop.trf.xlu0
        %v772 = vpop.trf.xlu0
        %v773 = vpop.trf.xlu0
        %v774 = vpop.trf.xlu0
        %v775 = vpop.trf.xlu0
        %v776 = vpop.trf.xlu0
        %v777 = vpop.trf.xlu0
        %v778 = vpop.trf.xlu0
        %v779 = vpop.trf.xlu0
        %v780 = vpop.trf.xlu0
        %v781 = vpop.trf.xlu0
        %v782 = vpop.trf.xlu0
        %v783 = vpop.trf.xlu0
        %784 = vxpose.xlu0.b32.start [1/16] %v714, 128
        %785 = vxpose.xlu0.b32.cont [2/16] 0.0, 128
        %786 = vxpose.xlu0.b32.cont [3/16] 0.0, 128
        %787 = vxpose.xlu0.b32.cont [4/16] 0.0, 128
        %788 = vxpose.xlu0.b32.cont [5/16] 0.0, 128
        %789 = vxpose.xlu0.b32.cont [6/16] 0.0, 128
        %790 = vxpose.xlu0.b32.cont [7/16] 0.0, 128
        %791 = vxpose.xlu0.b32.cont [8/16] 0.0, 128
        %792 = vxpose.xlu0.b32.cont [9/16] 0.0, 128
        %793 = vxpose.xlu0.b32.cont [10/16] 0.0, 128
        %794 = vxpose.xlu0.b32.cont [11/16] 0.0, 128
        %795 = vxpose.xlu0.b32.cont [12/16] 0.0, 128
        %796 = vxpose.xlu0.b32.cont [13/16] 0.0, 128
        %797 = vxpose.xlu0.b32.cont [14/16] 0.0, 128
        %798 = vxpose.xlu0.b32.cont [15/16] 0.0, 128
        %799 = vxpose.xlu0.b32.end [16/16] 0.0, 128
        %v800 = vpop.trf.xlu0
        %v801 = vpop.trf.xlu0
        %v802 = vpop.trf.xlu0
        %v803 = vpop.trf.xlu0
        %v804 = vpop.trf.xlu0
        %v805 = vpop.trf.xlu0
        %v806 = vpop.trf.xlu0
        %v807 = vpop.trf.xlu0
        %v808 = vpop.trf.xlu0
        %v809 = vpop.trf.xlu0
        %v810 = vpop.trf.xlu0
        %v811 = vpop.trf.xlu0
        %v812 = vpop.trf.xlu0
        %v813 = vpop.trf.xlu0
        %v814 = vpop.trf.xlu0
        %v815 = vpop.trf.xlu0
        %816 = vxpose.xlu0.b32.start [1/16] %v717, 128
        %817 = vxpose.xlu0.b32.cont [2/16] 0.0, 128
        %818 = vxpose.xlu0.b32.cont [3/16] 0.0, 128
        %819 = vxpose.xlu0.b32.cont [4/16] 0.0, 128
        %820 = vxpose.xlu0.b32.cont [5/16] 0.0, 128
        %821 = vxpose.xlu0.b32.cont [6/16] 0.0, 128
        %822 = vxpose.xlu0.b32.cont [7/16] 0.0, 128
        %823 = vxpose.xlu0.b32.cont [8/16] 0.0, 128
        %824 = vxpose.xlu0.b32.cont [9/16] 0.0, 128
        %825 = vxpose.xlu0.b32.cont [10/16] 0.0, 128
        %826 = vxpose.xlu0.b32.cont [11/16] 0.0, 128
        %827 = vxpose.xlu0.b32.cont [12/16] 0.0, 128
        %828 = vxpose.xlu0.b32.cont [13/16] 0.0, 128
        %829 = vxpose.xlu0.b32.cont [14/16] 0.0, 128
        %830 = vxpose.xlu0.b32.cont [15/16] 0.0, 128
        %831 = vxpose.xlu0.b32.end [16/16] 0.0, 128
        %v832 = vpop.trf.xlu0
        %v833 = vpop.trf.xlu0
        %v834 = vpop.trf.xlu0
        %v835 = vpop.trf.xlu0
        %v836 = vpop.trf.xlu0
        %v837 = vpop.trf.xlu0
        %v838 = vpop.trf.xlu0
        %v839 = vpop.trf.xlu0
        %v840 = vpop.trf.xlu0
        %v841 = vpop.trf.xlu0
        %v842 = vpop.trf.xlu0
        %v843 = vpop.trf.xlu0
        %v844 = vpop.trf.xlu0
        %v845 = vpop.trf.xlu0
        %v846 = vpop.trf.xlu0
        %v847 = vpop.trf.xlu0
        %v848 = vpack.c.bf16 %v736, %v736
        %v849 = vpack.c.bf16 %v768, %v768
        %v850 = vpack.c.bf16 %v800, %v800
        %v851 = vpack.c.bf16 %v832, %v832
        %852 = vst.msk [vmem:[%s396] sm:$0xf] %vm646, %v848
        %853 = vst.msk [vmem:[%s396 + $0x4] sm:$0xf] %vm646, %v849
        %854 = vst.msk [vmem:[%s396 + $0x8] sm:$0xf] %vm646, %v850
        %855 = vst.msk [vmem:[%s396 + $0xc] sm:$0xf] %vm646, %v851
        %v856 = vld [vmem:[#allocation8] sm:$0xf]
        %v857 = vld [vmem:[#allocation8 + $0x4] sm:$0xf]
        %v858 = vld [vmem:[#allocation8 + $0x8] sm:$0xf]
        %v859 = vld [vmem:[#allocation8 + $0xc] sm:$0xf]
        %v864 = vunpack.c.l.b16 %v856
        %v865 = vunpack.c.l.b16 %v857
        %v866 = vunpack.c.l.b16 %v858
        %v867 = vunpack.c.l.b16 %v859
        %v868 = vpack.c.b16 %v865, %v864
        %v869 = vpack.c.b16 %v867, %v866
        %v871 = vsel %vm408, %v868, 0
        %v874 = vsel %vm408, %v869, 0
        %876 = vmatprep.subr.bf16.mxu0 0
        %877 = vmatpush1.bf16.xpose.msra.mxu0 0
        %878 = vmatprep.subr.bf16.mxu0 0
        %879 = vmatpush1.bf16.xpose.msra.mxu0 0
        %880 = vmatprep.subr.bf16.mxu0 0
        %881 = vmatpush1.bf16.xpose.msra.mxu0 0
        %882 = vmatprep.subr.bf16.mxu0 0
        %883 = vmatpush1.bf16.xpose.msra.mxu0 0
        %884 = vmatprep.subr.bf16.mxu0 0
        %885 = vmatpush1.bf16.xpose.msra.mxu0 0
        %886 = vmatprep.subr.bf16.mxu0 0
        %887 = vmatpush1.bf16.xpose.msra.mxu0 0
        %888 = vmatprep.subr.bf16.mxu0 0
        %889 = vmatpush1.bf16.xpose.msra.mxu0 0
        %890 = vmatprep.subr.bf16.mxu0 0
        %891 = vmatpush1.bf16.xpose.msra.mxu0 %v459
        %892 = vmatprep.subr.bf16.mxu0 0
        %893 = vmatpush2.bf16.xpose.msra.mxu0 0
        %894 = vmatprep.subr.bf16.mxu0 0
        %895 = vmatpush2.bf16.xpose.msra.mxu0 0
        %896 = vmatprep.subr.bf16.mxu0 0
        %897 = vmatpush2.bf16.xpose.msra.mxu0 0
        %898 = vmatprep.subr.bf16.mxu0 0
        %899 = vmatpush2.bf16.xpose.msra.mxu0 0
        %900 = vmatprep.subr.bf16.mxu0 0
        %901 = vmatpush2.bf16.xpose.msra.mxu0 0
        %902 = vmatprep.subr.bf16.mxu0 0
        %903 = vmatpush2.bf16.xpose.msra.mxu0 0
        %904 = vmatprep.subr.bf16.mxu0 0
        %905 = vmatpush2.bf16.xpose.msra.mxu0 0
        %906 = vmatprep.subr.bf16.mxu0 0
        %907 = vmatpush2.bf16.xpose.msra.mxu0 0
        %908 = vmatprep.mubr.bf16.mxu0 0
        %909 = vmatmul.mubr.bf16.gmra.mxu0 %v871
        %v910 = vpop.f32.mrf.mxu0
        %v911 = vadd.f32 0.0, %v910
        %v912 = vpop.f32.mrf.mxu0
        %v913 = vpop.f32.mrf.mxu0
        %v914 = vadd.f32 0.0, %v913
        %v915 = vpop.f32.mrf.mxu0
        %916 = vmatprep.mubr.bf16.mxu0 0
        %917 = vmatmul.mubr.bf16.gmra.mxu0 %v874
        %v918 = vpop.f32.mrf.mxu0
        %v919 = vadd.f32 0.0, %v918
        %v920 = vpop.f32.mrf.mxu0
        %v921 = vpop.f32.mrf.mxu0
        %v922 = vadd.f32 0.0, %v921
        %v923 = vpop.f32.mrf.mxu0
        %924 = vdwg.mxu0
        %925 = vxpose.xlu0.b32.start [1/16] %v911, 128
        %926 = vxpose.xlu0.b32.cont [2/16] 0.0, 128
        %927 = vxpose.xlu0.b32.cont [3/16] 0.0, 128
        %928 = vxpose.xlu0.b32.cont [4/16] 0.0, 128
        %929 = vxpose.xlu0.b32.cont [5/16] 0.0, 128
        %930 = vxpose.xlu0.b32.cont [6/16] 0.0, 128
        %931 = vxpose.xlu0.b32.cont [7/16] 0.0, 128
        %932 = vxpose.xlu0.b32.cont [8/16] 0.0, 128
        %933 = vxpose.xlu0.b32.cont [9/16] 0.0, 128
        %934 = vxpose.xlu0.b32.cont [10/16] 0.0, 128
        %935 = vxpose.xlu0.b32.cont [11/16] 0.0, 128
        %936 = vxpose.xlu0.b32.cont [12/16] 0.0, 128
        %937 = vxpose.xlu0.b32.cont [13/16] 0.0, 128
        %938 = vxpose.xlu0.b32.cont [14/16] 0.0, 128
        %939 = vxpose.xlu0.b32.cont [15/16] 0.0, 128
        %940 = vxpose.xlu0.b32.end [16/16] 0.0, 128
        %v941 = vpop.trf.xlu0
        %v942 = vpop.trf.xlu0
        %v943 = vpop.trf.xlu0
        %v944 = vpop.trf.xlu0
        %v945 = vpop.trf.xlu0
        %v946 = vpop.trf.xlu0
        %v947 = vpop.trf.xlu0
        %v948 = vpop.trf.xlu0
        %v949 = vpop.trf.xlu0
        %v950 = vpop.trf.xlu0
        %v951 = vpop.trf.xlu0
        %v952 = vpop.trf.xlu0
        %v953 = vpop.trf.xlu0
        %v954 = vpop.trf.xlu0
        %v955 = vpop.trf.xlu0
        %v956 = vpop.trf.xlu0
        %957 = vxpose.xlu0.b32.start [1/16] %v914, 128
        %958 = vxpose.xlu0.b32.cont [2/16] 0.0, 128
        %959 = vxpose.xlu0.b32.cont [3/16] 0.0, 128
        %960 = vxpose.xlu0.b32.cont [4/16] 0.0, 128
        %961 = vxpose.xlu0.b32.cont [5/16] 0.0, 128
        %962 = vxpose.xlu0.b32.cont [6/16] 0.0, 128
        %963 = vxpose.xlu0.b32.cont [7/16] 0.0, 128
        %964 = vxpose.xlu0.b32.cont [8/16] 0.0, 128
        %965 = vxpose.xlu0.b32.cont [9/16] 0.0, 128
        %966 = vxpose.xlu0.b32.cont [10/16] 0.0, 128
        %967 = vxpose.xlu0.b32.cont [11/16] 0.0, 128
        %968 = vxpose.xlu0.b32.cont [12/16] 0.0, 128
        %969 = vxpose.xlu0.b32.cont [13/16] 0.0, 128
        %970 = vxpose.xlu0.b32.cont [14/16] 0.0, 128
        %971 = vxpose.xlu0.b32.cont [15/16] 0.0, 128
        %972 = vxpose.xlu0.b32.end [16/16] 0.0, 128
        %v973 = vpop.trf.xlu0
        %v974 = vpop.trf.xlu0
        %v975 = vpop.trf.xlu0
        %v976 = vpop.trf.xlu0
        %v977 = vpop.trf.xlu0
        %v978 = vpop.trf.xlu0
        %v979 = vpop.trf.xlu0
        %v980 = vpop.trf.xlu0
        %v981 = vpop.trf.xlu0
        %v982 = vpop.trf.xlu0
        %v983 = vpop.trf.xlu0
        %v984 = vpop.trf.xlu0
        %v985 = vpop.trf.xlu0
        %v986 = vpop.trf.xlu0
        %v987 = vpop.trf.xlu0
        %v988 = vpop.trf.xlu0
        %989 = vxpose.xlu0.b32.start [1/16] %v919, 128
        %990 = vxpose.xlu0.b32.cont [2/16] 0.0, 128
        %991 = vxpose.xlu0.b32.cont [3/16] 0.0, 128
        %992 = vxpose.xlu0.b32.cont [4/16] 0.0, 128
        %993 = vxpose.xlu0.b32.cont [5/16] 0.0, 128
        %994 = vxpose.xlu0.b32.cont [6/16] 0.0, 128
        %995 = vxpose.xlu0.b32.cont [7/16] 0.0, 128
        %996 = vxpose.xlu0.b32.cont [8/16] 0.0, 128
        %997 = vxpose.xlu0.b32.cont [9/16] 0.0, 128
        %998 = vxpose.xlu0.b32.cont [10/16] 0.0, 128
        %999 = vxpose.xlu0.b32.cont [11/16] 0.0, 128
        %1000 = vxpose.xlu0.b32.cont [12/16] 0.0, 128
        %1001 = vxpose.xlu0.b32.cont [13/16] 0.0, 128
        %1002 = vxpose.xlu0.b32.cont [14/16] 0.0, 128
        %1003 = vxpose.xlu0.b32.cont [15/16] 0.0, 128
        %1004 = vxpose.xlu0.b32.end [16/16] 0.0, 128
        %v1005 = vpop.trf.xlu0
        %v1006 = vpop.trf.xlu0
        %v1007 = vpop.trf.xlu0
        %v1008 = vpop.trf.xlu0
        %v1009 = vpop.trf.xlu0
        %v1010 = vpop.trf.xlu0
        %v1011 = vpop.trf.xlu0
        %v1012 = vpop.trf.xlu0
        %v1013 = vpop.trf.xlu0
        %v1014 = vpop.trf.xlu0
        %v1015 = vpop.trf.xlu0
        %v1016 = vpop.trf.xlu0
        %v1017 = vpop.trf.xlu0
        %v1018 = vpop.trf.xlu0
        %v1019 = vpop.trf.xlu0
        %v1020 = vpop.trf.xlu0
        %1021 = vxpose.xlu0.b32.start [1/16] %v922, 128
        %1022 = vxpose.xlu0.b32.cont [2/16] 0.0, 128
        %1023 = vxpose.xlu0.b32.cont [3/16] 0.0, 128
        %1024 = vxpose.xlu0.b32.cont [4/16] 0.0, 128
        %1025 = vxpose.xlu0.b32.cont [5/16] 0.0, 128
        %1026 = vxpose.xlu0.b32.cont [6/16] 0.0, 128
        %1027 = vxpose.xlu0.b32.cont [7/16] 0.0, 128
        %1028 = vxpose.xlu0.b32.cont [8/16] 0.0, 128
        %1029 = vxpose.xlu0.b32.cont [9/16] 0.0, 128
        %1030 = vxpose.xlu0.b32.cont [10/16] 0.0, 128
        %1031 = vxpose.xlu0.b32.cont [11/16] 0.0, 128
        %1032 = vxpose.xlu0.b32.cont [12/16] 0.0, 128
        %1033 = vxpose.xlu0.b32.cont [13/16] 0.0, 128
        %1034 = vxpose.xlu0.b32.cont [14/16] 0.0, 128
        %1035 = vxpose.xlu0.b32.cont [15/16] 0.0, 128
        %1036 = vxpose.xlu0.b32.end [16/16] 0.0, 128
        %v1037 = vpop.trf.xlu0
        %v1038 = vpop.trf.xlu0
        %v1039 = vpop.trf.xlu0
        %v1040 = vpop.trf.xlu0
        %v1041 = vpop.trf.xlu0
        %v1042 = vpop.trf.xlu0
        %v1043 = vpop.trf.xlu0
        %v1044 = vpop.trf.xlu0
        %v1045 = vpop.trf.xlu0
        %v1046 = vpop.trf.xlu0
        %v1047 = vpop.trf.xlu0
        %v1048 = vpop.trf.xlu0
        %v1049 = vpop.trf.xlu0
        %v1050 = vpop.trf.xlu0
        %v1051 = vpop.trf.xlu0
        %v1052 = vpop.trf.xlu0
        %v1053 = vpack.c.bf16 %v941, %v941
        %v1054 = vpack.c.bf16 %v973, %v973
        %v1055 = vpack.c.bf16 %v1005, %v1005
        %v1056 = vpack.c.bf16 %v1037, %v1037
        %1057 = vst.msk [vmem:[%s403] sm:$0xf] %vm646, %v1053
        %1058 = vst.msk [vmem:[%s403 + $0x4] sm:$0xf] %vm646, %v1054
        %1059 = vst.msk [vmem:[%s403 + $0x8] sm:$0xf] %vm646, %v1055
        %1060 = vst.msk [vmem:[%s403 + $0xc] sm:$0xf] %vm646, %v1056
        %s1061 = sand.u32 %s186, 1
        %s1062 = scalar_lea.sflag [#allocation4], %s1061
        %s1063 = sand.u32 %s186, 1
        %s1064 = smul.addr %s1063, 16
        %s1065 = scalar_lea.vmem [#allocation10], %s1064
        %s1066 = sand.u32 %s31, 1
        %s1067 = scalar_lea.sflag [#allocation12], %s1066
        %s1068 = sand.u32 %s214, 1
        %s1069 = smul.addr %s1068, 16
        %s1070 = scalar_lea.vmem [#allocation11], %s1069
        %s1071 = sand.u32 %s31, 1
        %s1072 = scalar_lea.sflag [#allocation12], %s1071
        %s1073 = sand.u32 %s242, 1
        %s1074 = smul.addr %s1073, 16
        %s1075 = scalar_lea.vmem [#allocation13], %s1074
        // Predicated region
        $region61: #{tpu_custom_call.1} parent=43 // pred_check
          %p1076 = pneg %p196
        $region62: #{tpu_custom_call.1} parent=43 // pred_check_branch
          %1078 = sbr.rel (%p1076) target = $region64
        $region63: #{tpu_custom_call.1} parent=43 // pred_region
          %s1080 = ssub.s32 256, 256
          %1081 = vsyncadd %s1062, %s1080
          %s1082 = smul.addr %s35, 4
          %s1083 = sadd.s32 %s36, %s1082
          %s1084 = smul.addr %s1083, 64
          %s1085 = scalar_lea.hbm %s6, %s1084
          %s1086 = sshll.u32 %s1065, 4
          %s1087 = int_to_ptr.vmem [resolvable:$true] %s1086
          %1092 = dma.vmem_to_hbm [thread:$0]  %s1087, 256, %s1085, %s1062, 64, 64, 4
        $region64: #{tpu_custom_call.1} parent=43 // pred_fallthru
          _
        // Predicated region
        $region65: #{tpu_custom_call.1} parent=43 // pred_check
          %p1093 = pneg %p224
        $region66: #{tpu_custom_call.1} parent=43 // pred_check_branch
          %1095 = sbr.rel (%p1093) target = $region68
        $region67: #{tpu_custom_call.1} parent=43 // pred_region
          %s1097 = ssub.s32 256, 256
          %1098 = vsyncadd %s1067, %s1097
          %s1099 = smul.addr %s35, 4
          %s1100 = sadd.s32 %s36, %s1099
          %s1101 = smul.addr %s1100, 64
          %s1102 = scalar_lea.hbm %s7, %s1101
          %s1103 = sshll.u32 %s1070, 4
          %s1104 = int_to_ptr.vmem [resolvable:$true] %s1103
          %1109 = dma.vmem_to_hbm [thread:$0]  %s1104, 256, %s1102, %s1067, 64, 64, 4
        $region68: #{tpu_custom_call.1} parent=43 // pred_fallthru
          _
        // Predicated region
        $region69: #{tpu_custom_call.1} parent=43 // pred_check
          %p1110 = pneg %p252
        $region70: #{tpu_custom_call.1} parent=43 // pred_check_branch
          %1112 = sbr.rel (%p1110) target = $region72
        $region71: #{tpu_custom_call.1} parent=43 // pred_region
          %s1114 = ssub.s32 256, 256
          %1115 = vsyncadd %s1072, %s1114
          %s1116 = smul.addr %s35, 4
          %s1117 = sadd.s32 %s36, %s1116
          %s1118 = smul.addr %s1117, 64
          %s1119 = scalar_lea.hbm %s8, %s1118
          %s1120 = sshll.u32 %s1075, 4
          %s1121 = int_to_ptr.vmem [resolvable:$true] %s1120
          %1126 = dma.vmem_to_hbm [thread:$0]  %s1121, 256, %s1119, %s1072, 64, 64, 4
        $region72: #{tpu_custom_call.1} parent=43 // pred_fallthru
          _
      $region44: #{tpu_custom_call.1} parent=5 // pred_fallthru
        _
      %p1127 = scmp.le.s32.totalorder 2, %s26
      // Predicated region
      $region73: #{tpu_custom_call.1} parent=5 // pred_check
        %p1128 = pneg %p1127
      $region74: #{tpu_custom_call.1} parent=5 // pred_check_branch
        %1130 = sbr.rel (%p1128) target = $region76
      $region75: #{tpu_custom_call.1} parent=5 // pred_region
        %s1131 = ssub.s32 %s26, 2
        // Predicated region
        $region77: #{tpu_custom_call.1} parent=75 // pred_check
          %p1132 = pneg %p202
        $region78: #{tpu_custom_call.1} parent=75 // pred_check_branch
          %1134 = sbr.rel (%p1132) target = $region80
        $region79: #{tpu_custom_call.1} parent=75 // pred_region
          %s1135 = sand.u32 %s187, 1
          %s1136 = scalar_lea.sflag [#allocation4], %s1135
          %s1137 = sand.u32 %s187, 1
          %s1138 = smul.addr %s1137, 16
          %s1139 = scalar_lea.vmem [#allocation10], %s1138
          %1140 = dma.done %s1136, 256
        $region80: #{tpu_custom_call.1} parent=75 // pred_fallthru
          _
        // Predicated region
        $region81: #{tpu_custom_call.1} parent=75 // pred_check
          %p1141 = pneg %p230
        $region82: #{tpu_custom_call.1} parent=75 // pred_check_branch
          %1143 = sbr.rel (%p1141) target = $region84
        $region83: #{tpu_custom_call.1} parent=75 // pred_region
          %s1144 = sand.u32 %s32, 1
          %s1145 = scalar_lea.sflag [#allocation12], %s1144
          %s1146 = sand.u32 %s215, 1
          %s1147 = smul.addr %s1146, 16
          %s1148 = scalar_lea.vmem [#allocation11], %s1147
          %1149 = dma.done %s1145, 256
        $region84: #{tpu_custom_call.1} parent=75 // pred_fallthru
          _
        // Predicated region
        $region85: #{tpu_custom_call.1} parent=75 // pred_check
          %p1150 = pneg %p258
        $region86: #{tpu_custom_call.1} parent=75 // pred_check_branch
          %1152 = sbr.rel (%p1150) target = $region88
        $region87: #{tpu_custom_call.1} parent=75 // pred_region
          %s1153 = sand.u32 %s32, 1
          %s1154 = scalar_lea.sflag [#allocation12], %s1153
          %s1155 = sand.u32 %s243, 1
          %s1156 = smul.addr %s1155, 16
          %s1157 = scalar_lea.vmem [#allocation13], %s1156
          %1158 = dma.done %s1154, 256
        $region88: #{tpu_custom_call.1} parent=75 // pred_fallthru
          _
      $region76: #{tpu_custom_call.1} parent=5 // pred_fallthru
        _
    $region6: #{tpu_custom_call.1} parent=1 // loop_footer
      %s30 = sadd.s32 1, %s26
    $region7: #{tpu_custom_call.1} parent=1 // loop_footer_branch
      %25 = sbr.rel target = $region3
    $region8: #{tpu_custom_call.1} parent=1 // loop_exit
      _
    %1159 = vsyncpa [#allocation3], 1
    %s1160 = scalar_lea.sflag [#allocation3], 1
    %1161 = vsyncpa %s1160, 1
    %1162 = vsyncpa [#allocation6], 1
    %1163 = vsyncpa [#allocation9], 1
    %1164 = vsyncpa [#allocation4], 1
    %s1165 = scalar_lea.sflag [#allocation4], 1
    %1166 = vsyncpa %s1165, 1
    %1167 = vsyncpa [#allocation12], 1
    %s1168 = scalar_lea.sflag [#allocation12], 1
    %1169 = vsyncpa %s1168, 1

</llo_original>
